<compile_context>
chip_gen: v5e
topology: v5e:2x2
jax: 0.10.0
libtpu: 0.0.40
codegen_flags: <defaults>
</compile_context>

<pallas_src>
import numpy as np
import jax
import jax.numpy as jnp
from jax.experimental import pallas as pl
from jax.experimental.pallas import tpu as pltpu


def _amc_value_kernel(x_ref, w_ref, b_ref, whead_ref, out_ref):
    Bt, n, d = x_ref.shape
    x = x_ref[...].astype(jnp.float32)                              # (Bt, n, d)
    x2 = x.reshape(Bt * n, d)                                       # (Bt*n, d)

    # ---- fused QKV projection: one (Bt*n, d) @ (d, 3d) MXU push -----------
    qkv = jnp.tanh(
        jnp.dot(x2, w_ref[...], preferred_element_type=jnp.float32)
        + b_ref[...])                                               # (Bt*n, 3d)
    q = qkv[:, 0 * d:1 * d].reshape(Bt, n, d)
    k = qkv[:, 1 * d:2 * d].reshape(Bt, n, d)
    v = qkv[:, 2 * d:3 * d].reshape(Bt, n, d)

    # ---- scores, batched over the Bt coalitions of this step --------------
    s = jnp.einsum('bqd,bkd->bqk', q, k,
                   preferred_element_type=jnp.float32)              # (Bt, n, n)
    # Per-row max shift cancels exactly in every prefix softmax (same shift on
    # numerator and denominator of each query row) -> exact & stable for any d.
    e = jnp.exp(s - jnp.max(s, axis=-1, keepdims=True))             # > 0

    # ---- closed-form prefix accumulation (no per-prefix loop) -------------
    #   feature_j = 1^T softmax(s[:j,:j]) v[:j]
    #   sum_j feature_j = w_cols @ v,
    #   w_cols[m] = sum_i e[i,m] * sum_{t=max(i,m)}^{n-2} 1/cum[i,t]
    #             = sum_i e[i,m] * min(S[i,i], S[i,m])
    row = jax.lax.broadcasted_iota(jnp.int32, (n, n), 0)
    col = jax.lax.broadcasted_iota(jnp.int32, (n, n), 1)
    upper = (row <= col).astype(jnp.float32)        # U[m', t] = [m' <= t]
    lower = (row >= col).astype(jnp.float32)        # L[t', t] = [t' >= t]
    eye = (row == col).astype(jnp.float32)
    not_last = (jax.lax.broadcasted_iota(jnp.int32, (1, n), 1)
                < (n - 1)).astype(jnp.float32)      # only prefixes j = 1..n-1

    e2 = e.reshape(Bt * n, n)
    cum = jnp.dot(e2, upper, preferred_element_type=jnp.float32)    # incl. cumsum
    dcol = pl.reciprocal(cum, approx=False) * not_last              # exact recip
    S = jnp.dot(dcol, lower,
                preferred_element_type=jnp.float32).reshape(Bt, n, n)  # rev. cumsum
    s_diag = jnp.sum(S * eye, axis=-1, keepdims=True)               # (Bt, n, 1)
    w_cols = jnp.sum(e * jnp.minimum(s_diag, S), axis=1)            # (Bt, n)

    # summed global features per coalition (VPU mul + sublane reduce)
    feat_sum = jnp.sum(w_cols[:, :, None] * v, axis=1)              # (Bt, d)

    # ---- critic head on the VPU, bias folded -------------------------------
    # sum_j critic(cat[feature_j, x_j]) = W_f.feat_sum + W_c.sum_j x_j + n*bias
    whead = whead_ref[...]
    x_sum = jnp.sum(x, axis=1)                                      # (Bt, d)
    head = (feat_sum * whead[0:1, :]          # W_feature
            + x_sum * whead[1:2, :]           # W_coalition
            + float(n) * whead[2:3, :])       # [bias, 0, ...]
    out_ref[...] = jnp.sum(head, axis=-1).reshape(1, 1, Bt)         # lane-dense row


def amc_value_net_batched(xs, packed, block_b=16):
    """B independent coalitions -> (B,) values.  Bt coalitions per grid step
    (Bt*n = 128 MXU rows at n=8; use block_b=32 for 256 rows on v6e/v7x)."""
    B, n, d = xs.shape
    Bt = int(block_b)
    num_blocks = -(-B // Bt)
    Bp = num_blocks * Bt
    if Bp != B:
        # Zero-padded coalitions are numerically safe (e > 0, denominators > 0)
        # and their outputs are discarded below.
        xs = jnp.concatenate([xs, jnp.zeros((Bp - B, n, d), xs.dtype)], axis=0)

    out = pl.pallas_call(
        _amc_value_kernel,
        out_shape=jax.ShapeDtypeStruct((num_blocks, 1, Bt), jnp.float32),
        grid=(num_blocks,),
        in_specs=[
            pl.BlockSpec((Bt, n, d), lambda g: (g, 0, 0)),     # Bt coalitions/step
            pl.BlockSpec((d, 3 * d), lambda g: (0, 0)),        # grid-invariant
            pl.BlockSpec((1, 3 * d), lambda g: (0, 0)),        # grid-invariant
            pl.BlockSpec((3, d), lambda g: (0, 0)),            # grid-invariant
        ],
        out_specs=pl.BlockSpec((1, 1, Bt), lambda g: (g, 0, 0)),
        compiler_params=pltpu.CompilerParams(
            # >= 2 grid steps + parallel semantics so v7x can shard across its
            # 2 TensorCores (switch to pltpu.CORE_PARALLEL if profiling shows
            # only one core used).
            dimension_semantics=("parallel",)),
    )(xs, packed["w_qkv"], packed["b_qkv"], packed["w_head"])
    return out.reshape(Bp)[:B]


def amc_value_net(x, goal, packed):
    """Pallas implementation of AMCValueNet.forward (default head, num=1)."""
    del goal  # unused by the PyTorch forward as well
    return amc_value_net_batched(x[None], packed)                   # shape (1,)


def init_params(key, input_dim, num=1):
    """Deterministic synthetic init (nn.Linear default for Q/K/V,
    norm_col_init(std=0.1) + zero bias for critic_linear). Raw layout."""
    ks = jax.random.split(key, 7)
    bound = float(1.0 / np.sqrt(input_dim))

    def lin(kw, kb):
        w = jax.random.uniform(kw, (input_dim, input_dim), jnp.float32, -bound, bound)
        b = jax.random.uniform(kb, (1, input_dim), jnp.float32, -bound, bound)
        return w, b

    wq, bq = lin(ks[0], ks[1])
    wk, bk = lin(ks[2], ks[3])
    wv, bv = lin(ks[4], ks[5])

    wc = jax.random.normal(ks[6], (num, 2 * input_dim), jnp.float32)
    wc = wc * 0.1 / jnp.sqrt(jnp.sum(wc ** 2, axis=1, keepdims=True))  # norm_col_init
    bc = jnp.zeros((num, 1), jnp.float32)                              # bias.fill_(0)

    return dict(wq=wq, bq=bq, wk=wk, bk=bk, wv=wv, bv=bv, wc=wc, bc=bc)


def pack_params(p):
    """Host-side packing (layout plumbing is free)."""
    d = p["wq"].shape[0]
    w_qkv = jnp.concatenate([p["wq"].T, p["wk"].T, p["wv"].T], axis=1)   # (d, 3d)
    b_qkv = jnp.concatenate([p["bq"], p["bk"], p["bv"]], axis=1)         # (1, 3d)
    wc2 = p["wc"].reshape(2, d)                                          # [W_f ; W_c]
    bias_row = jnp.zeros((1, d), jnp.float32).at[0, 0].set(p["bc"][0, 0])
    w_head = jnp.concatenate([wc2, bias_row], axis=0)                    # (3, d)
    return dict(w_qkv=w_qkv, b_qkv=b_qkv, w_head=w_head)


def reference_forward(x, params):
    """Pure-JAX transcription of the PyTorch forward loop (for validation)."""
    n, d = x.shape

    def critic(feat, coal):
        return params["wc"] @ jnp.concatenate([feat, coal]) + params["bc"][:, 0]

    vals = [critic(jnp.zeros((d,), jnp.float32), x[0])]
    for j in range(1, n):
        xs = x[:j]
        q = jnp.tanh(xs @ params["wq"].T + params["bq"][0])
        k = jnp.tanh(xs @ params["wk"].T + params["bk"][0])
        v = jnp.tanh(xs @ params["wv"].T + params["bv"][0])
        p = jax.nn.softmax(q @ k.T, axis=-1)
        feat = (p @ v).sum(axis=0)                                       # global feature
        vals.append(critic(feat, x[j]))
    return jnp.concatenate(vals).sum().reshape(1)


if __name__ == "__main__":
    key = jax.random.PRNGKey(0)
    kx, kg, kp = jax.random.split(key, 3)

    B, n, input_dim = 32, 8, 32         # 32 coalitions of 8 agents, 32-d features
    xs = jax.random.normal(kx, (B, n, input_dim), jnp.float32)
    goal = jax.random.normal(kg, (n, input_dim), jnp.float32)  # unused, like PyTorch
    raw = init_params(kp, input_dim, num=1)
    packed = pack_params(raw)

    TOL = 2e-3

    # Single-coalition API (matches the PyTorch forward signature / semantics).
    v1 = jax.block_until_ready(amc_value_net(xs[0], goal, packed))
    ref1 = jax.block_until_ready(reference_forward(xs[0], raw))
    assert v1.shape == (1,)
    assert jnp.allclose(v1, ref1, rtol=TOL, atol=TOL), (v1, ref1)

    # Batched API: Bt=16 coalitions per grid step -> 2 parallel grid steps.
    vb = jax.block_until_ready(amc_value_net_batched(xs, packed, block_b=16))
    refb = jax.block_until_ready(
        jnp.stack([reference_forward(xs[i], raw)[0] for i in range(B)]))
    assert vb.shape == (B,)
    assert jnp.allclose(vb, refb, rtol=TOL, atol=TOL), (vb, refb)

    print("KERNEL_OK")
</pallas_src>

<mosaic_0001>
module attributes {stable_mosaic.version = 11 : i64} {
  func.func @_amc_value_kernel(%arg0: i32, %arg1: memref<16x8x32xf32, #tpu.memory_space<vmem>>, %arg2: memref<32x96xf32, #tpu.memory_space<vmem>>, %arg3: memref<1x96xf32, #tpu.memory_space<vmem>>, %arg4: memref<3x32xf32, #tpu.memory_space<vmem>>, %arg5: memref<1x1x16xf32, #tpu.memory_space<vmem>>) attributes {dimension_semantics = [#tpu.dimension_semantics<parallel>], iteration_bounds = array<i64: 1>, scalar_prefetch = 0 : i64, scratch_operands = 0 : i64, tpu.core_type = #tpu.core_type<tc>, window_params = [{transform_indices = @transform_0, window_bounds = array<i64: 16, 8, 32>}, {pipeline_mode = #tpu.pipeline_mode<synchronous>, transform_indices = @transform_1, window_bounds = array<i64: 32, 96>}, {pipeline_mode = #tpu.pipeline_mode<synchronous>, transform_indices = @transform_2, window_bounds = array<i64: 1, 96>}, {pipeline_mode = #tpu.pipeline_mode<synchronous>, transform_indices = @transform_3, window_bounds = array<i64: 3, 32>}, {transform_indices = @transform_4, window_bounds = array<i64: 1, 1, 16>}]} {
    %c0 = arith.constant 0 : index
    %c0_0 = arith.constant 0 : index
    %c0_1 = arith.constant 0 : index
    %0 = vector.load %arg1[%c0, %c0_0, %c0_1] : memref<16x8x32xf32, #tpu.memory_space<vmem>>, vector<16x8x32xf32>
    %1 = vector.shape_cast %0 : vector<16x8x32xf32> to vector<128x32xf32>
    %c0_2 = arith.constant 0 : index
    %c0_3 = arith.constant 0 : index
    %2 = vector.load %arg2[%c0_2, %c0_3] : memref<32x96xf32, #tpu.memory_space<vmem>>, vector<32x96xf32>
    %cst = arith.constant dense<0.000000e+00> : vector<128x96xf32>
    %3 = tpu.matmul %1, %2, %cst {dimension_numbers = #tpu.dot_dimension_numbers<[1], [0], [0], [1], [0, 0, 1, 1], [], []>} : vector<128x32xf32>, vector<32x96xf32>, vector<128x96xf32> -> vector<128x96xf32>
    %c0_4 = arith.constant 0 : index
    %c0_5 = arith.constant 0 : index
    %4 = vector.load %arg3[%c0_4, %c0_5] : memref<1x96xf32, #tpu.memory_space<vmem>>, vector<1x96xf32>
    %5 = vector.broadcast %4 : vector<1x96xf32> to vector<128x96xf32>
    %6 = arith.addf %3, %5 : vector<128x96xf32>
    %7 = math.tanh %6 : vector<128x96xf32>
    %8 = vector.extract_strided_slice %7 {offsets = [0, 0], sizes = [128, 32], strides = [1, 1]} : vector<128x96xf32> to vector<128x32xf32>
    %9 = vector.shape_cast %8 : vector<128x32xf32> to vector<16x8x32xf32>
    %10 = vector.extract_strided_slice %7 {offsets = [0, 32], sizes = [128, 32], strides = [1, 1]} : vector<128x96xf32> to vector<128x32xf32>
    %11 = vector.shape_cast %10 : vector<128x32xf32> to vector<16x8x32xf32>
    %12 = vector.extract_strided_slice %7 {offsets = [0, 64], sizes = [128, 32], strides = [1, 1]} : vector<128x96xf32> to vector<128x32xf32>
    %13 = vector.shape_cast %12 : vector<128x32xf32> to vector<16x8x32xf32>
    "tpu.trace_start"() <{level = 10 : i32, message = "bqd,bkd->bqk"}> : () -> ()
    %cst_6 = arith.constant dense<0.000000e+00> : vector<16x8x8xf32>
    %14 = tpu.matmul %9, %11, %cst_6 {dimension_numbers = #tpu.dot_dimension_numbers<[2], [2], [1], [1], [0, 0, 0, 1, 1, 1], [0], [0]>} : vector<16x8x32xf32>, vector<16x8x32xf32>, vector<16x8x8xf32> -> vector<16x8x8xf32>
    "tpu.trace_stop"() : () -> ()
    %cst_7 = arith.constant dense<0xFF800000> : vector<16x8xf32>
    %15 = vector.multi_reduction <maximumf>, %14, %cst_7 [2] : vector<16x8x8xf32> to vector<16x8xf32>
    %16 = vector.shape_cast %15 : vector<16x8xf32> to vector<16x8x1xf32>
    %17 = vector.broadcast %16 : vector<16x8x1xf32> to vector<16x8x8xf32>
    %18 = arith.subf %14, %17 : vector<16x8x8xf32>
    %19 = math.exp %18 : vector<16x8x8xf32>
    %20 = tpu.iota {dimensions = array<i32: 0>} : vector<8x8xi32>
    %21 = tpu.iota {dimensions = array<i32: 1>} : vector<8x8xi32>
    %22 = arith.cmpi sle, %20, %21 : vector<8x8xi32>
    %23 = arith.extui %22 : vector<8x8xi1> to vector<8x8xi32>
    %24 = arith.sitofp %23 : vector<8x8xi32> to vector<8x8xf32>
    %25 = arith.cmpi sge, %20, %21 : vector<8x8xi32>
    %26 = arith.extui %25 : vector<8x8xi1> to vector<8x8xi32>
    %27 = arith.sitofp %26 : vector<8x8xi32> to vector<8x8xf32>
    %28 = arith.cmpi eq, %20, %21 : vector<8x8xi32>
    %29 = arith.extui %28 : vector<8x8xi1> to vector<8x8xi32>
    %30 = arith.sitofp %29 : vector<8x8xi32> to vector<8x8xf32>
    %31 = tpu.iota {dimensions = array<i32: 1>} : vector<1x8xi32>
    %c7_i32 = arith.constant 7 : i32
    %32 = vector.broadcast %c7_i32 : i32 to vector<1x8xi32>
    %33 = arith.cmpi slt, %31, %32 : vector<1x8xi32>
    %34 = arith.extui %33 : vector<1x8xi1> to vector<1x8xi32>
    %35 = arith.sitofp %34 : vector<1x8xi32> to vector<1x8xf32>
    %36 = vector.shape_cast %19 : vector<16x8x8xf32> to vector<128x8xf32>
    %cst_8 = arith.constant dense<0.000000e+00> : vector<128x8xf32>
    %37 = tpu.matmul %36, %24, %cst_8 {dimension_numbers = #tpu.dot_dimension_numbers<[1], [0], [0], [1], [0, 0, 1, 1], [], []>} : vector<128x8xf32>, vector<8x8xf32>, vector<128x8xf32> -> vector<128x8xf32>
    %38 = tpu.reciprocal %37 : vector<128x8xf32> -> vector<128x8xf32>
    %39 = vector.broadcast %35 : vector<1x8xf32> to vector<128x8xf32>
    %40 = arith.mulf %38, %39 : vector<128x8xf32>
    %cst_9 = arith.constant dense<0.000000e+00> : vector<128x8xf32>
    %41 = tpu.matmul %40, %27, %cst_9 {dimension_numbers = #tpu.dot_dimension_numbers<[1], [0], [0], [1], [0, 0, 1, 1], [], []>} : vector<128x8xf32>, vector<8x8xf32>, vector<128x8xf32> -> vector<128x8xf32>
    %42 = vector.shape_cast %41 : vector<128x8xf32> to vector<16x8x8xf32>
    %43 = vector.shape_cast %30 : vector<8x8xf32> to vector<1x8x8xf32>
    %44 = vector.broadcast %43 : vector<1x8x8xf32> to vector<16x8x8xf32>
    %45 = arith.mulf %42, %44 : vector<16x8x8xf32>
    %cst_10 = arith.constant dense<0.000000e+00> : vector<16x8xf32>
    %46 = vector.multi_reduction <add>, %45, %cst_10 [2] : vector<16x8x8xf32> to vector<16x8xf32>
    %47 = vector.shape_cast %46 : vector<16x8xf32> to vector<16x8x1xf32>
    %48 = vector.broadcast %47 : vector<16x8x1xf32> to vector<16x8x8xf32>
    %49 = arith.minimumf %48, %42 : vector<16x8x8xf32>
    %50 = arith.mulf %19, %49 : vector<16x8x8xf32>
    %cst_11 = arith.constant dense<0.000000e+00> : vector<16x8xf32>
    %51 = vector.multi_reduction <add>, %50, %cst_11 [1] : vector<16x8x8xf32> to vector<16x8xf32>
    %52 = vector.shape_cast %51 : vector<16x8xf32> to vector<16x8x1xf32>
    %53 = vector.broadcast %52 : vector<16x8x1xf32> to vector<16x8x32xf32>
    %54 = arith.mulf %53, %13 : vector<16x8x32xf32>
    %cst_12 = arith.constant dense<0.000000e+00> : vector<16x32xf32>
    %55 = vector.multi_reduction <add>, %54, %cst_12 [1] : vector<16x8x32xf32> to vector<16x32xf32>
    %c0_13 = arith.constant 0 : index
    %c0_14 = arith.constant 0 : index
    %56 = vector.load %arg4[%c0_13, %c0_14] : memref<3x32xf32, #tpu.memory_space<vmem>>, vector<3x32xf32>
    %cst_15 = arith.constant dense<0.000000e+00> : vector<16x32xf32>
    %57 = vector.multi_reduction <add>, %0, %cst_15 [1] : vector<16x8x32xf32> to vector<16x32xf32>
    %58 = vector.extract_strided_slice %56 {offsets = [0, 0], sizes = [1, 32], strides = [1, 1]} : vector<3x32xf32> to vector<1x32xf32>
    %59 = vector.broadcast %58 : vector<1x32xf32> to vector<16x32xf32>
    %60 = arith.mulf %55, %59 : vector<16x32xf32>
    %61 = vector.extract_strided_slice %56 {offsets = [1, 0], sizes = [1, 32], strides = [1, 1]} : vector<3x32xf32> to vector<1x32xf32>
    %62 = vector.broadcast %61 : vector<1x32xf32> to vector<16x32xf32>
    %63 = arith.mulf %57, %62 : vector<16x32xf32>
    %64 = arith.addf %60, %63 : vector<16x32xf32>
    %65 = vector.extract_strided_slice %56 {offsets = [2, 0], sizes = [1, 32], strides = [1, 1]} : vector<3x32xf32> to vector<1x32xf32>
    %cst_16 = arith.constant 8.000000e+00 : f32
    %66 = vector.broadcast %cst_16 : f32 to vector<1x32xf32>
    %67 = arith.mulf %66, %65 : vector<1x32xf32>
    %68 = vector.broadcast %67 : vector<1x32xf32> to vector<16x32xf32>
    %69 = arith.addf %64, %68 : vector<16x32xf32>
    %cst_17 = arith.constant dense<0.000000e+00> : vector<16xf32>
    %70 = vector.multi_reduction <add>, %69, %cst_17 [1] : vector<16x32xf32> to vector<16xf32>
    %71 = vector.shape_cast %70 : vector<16xf32> to vector<1x1x16xf32>
    %c0_18 = arith.constant 0 : index
    %c0_19 = arith.constant 0 : index
    %c0_20 = arith.constant 0 : index
    %72 = vector.load %arg5[%c0_18, %c0_19, %c0_20] : memref<1x1x16xf32, #tpu.memory_space<vmem>>, vector<1x1x16xf32>
    tpu.vector_store %arg5[%c0_18, %c0_19, %c0_20], %71 {strides = array<i32>} : memref<1x1x16xf32, #tpu.memory_space<vmem>>, vector<1x1x16xf32>,
    return
  }
  func.func @transform_0(%arg0: i32) -> (i32, i32, i32) {
    %c0_i32 = arith.constant 0 : i32
    %c0_i32_0 = arith.constant 0 : i32
    %c0_i32_1 = arith.constant 0 : i32
    return %arg0, %c0_i32, %c0_i32_0 : i32, i32, i32
  }
  func.func @transform_1(%arg0: i32) -> (i32, i32) {
    %c0_i32 = arith.constant 0 : i32
    %c0_i32_0 = arith.constant 0 : i32
    %c0_i32_1 = arith.constant 0 : i32
    return %c0_i32, %c0_i32_0 : i32, i32
  }
  func.func @transform_2(%arg0: i32) -> (i32, i32) {
    %c0_i32 = arith.constant 0 : i32
    %c0_i32_0 = arith.constant 0 : i32
    %c0_i32_1 = arith.constant 0 : i32
    return %c0_i32, %c0_i32_0 : i32, i32
  }
  func.func @transform_3(%arg0: i32) -> (i32, i32) {
    %c0_i32 = arith.constant 0 : i32
    %c0_i32_0 = arith.constant 0 : i32
    %c0_i32_1 = arith.constant 0 : i32
    return %c0_i32, %c0_i32_0 : i32, i32
  }
  func.func @transform_4(%arg0: i32) -> (i32, i32, i32) {
    %c0_i32 = arith.constant 0 : i32
    %c0_i32_0 = arith.constant 0 : i32
    %c0_i32_1 = arith.constant 0 : i32
    return %arg0, %c0_i32, %c0_i32_0 : i32, i32, i32
  }
}

</mosaic_0001>

<llo_original>
// kernel: tpu_custom_call.1
$region0: #{tpu_custom_call.1}
  #allocation0 [shape = 'u32[]', space=smem, size = 0x4, offset = 0x4, fixed_abs, tag = 'smem constant byte address 0x4 - core index']
  #allocation1 [shape = 'u32[72,128]{1,0:T(1,128)}', space=vmem, size = 0x9000, scoped, tag = 'internal scratch']
  %s0 = inlined_call_operand.hbm [shape: f32[16,8,32], index: 0, kind: input, shape index: {}]
  %s1 = inlined_call_operand.hbm [shape: f32[32,96], index: 1, kind: input, shape index: {}]
  %s2 = inlined_call_operand.vmem [shape: f32[1,96], index: 2, kind: input, shape index: {}]
  %s3 = inlined_call_operand.hbm [shape: f32[3,32], index: 3, kind: input, shape index: {}]
  %s4 = inlined_call_operand.hbm [shape: f32[1,1,16], index: 4, kind: output, shape index: {}]
  %s5 = sld [smem:[#allocation0]]
  $region38: #{tpu_custom_call.1} parent=0
    _
  %s7 = ssub.s32 1, %s5
  %s8 = scalar_select 0, %s7, %s5
  $region1: #{tpu_custom_call.1} parent=0
    #allocation2 [shape = 'u8[65536]{0}', space=vmem, size = 0x10000, scoped, tag = 'input window, operand 0, single buffered']
    #allocation3 [shape = 's32[1]{0}', space=sflag, size = 0x4, scoped, tag = 'scoped memory for tpu_custom_call.1']
    #allocation4 [shape = 's32[1]{0}', space=sflag, size = 0x4, scoped, tag = 'scoped memory for tpu_custom_call.1']
    #allocation5 [shape = 'u8[16384]{0}', space=vmem, size = 0x4000, scoped, tag = 'input window, operand 1, single buffered']
    #allocation6 [shape = 's32[1]{0}', space=sflag, size = 0x4, scoped, tag = 'scoped memory for tpu_custom_call.1']
    #allocation7 [shape = 'u8[2048]{0}', space=vmem, size = 0x800, scoped, tag = 'input window, operand 3, single buffered']
    #allocation8 [shape = 'u8[512]{0}', space=vmem, size = 0x400, scoped, tag = 'output window, operand 0, single buffered']
    %9 = vsyncpa [#allocation3], 0
    %10 = vsyncpa [#allocation6], 0
    %11 = vsyncpa [#allocation4], 0
    // Predicated region
    $region2: #{tpu_custom_call.1} parent=1 // pred_check
      _
    $region3: #{tpu_custom_call.1} parent=1 // pred_check_branch
      %13 = sbr.rel (0) target = $region5
    $region4: #{tpu_custom_call.1} parent=1 // pred_region
      %15 = vsyncadd [#allocation3], 0
      %s16 = sshll.u32 %s0, 4
      %s17 = int_to_ptr.hbm [resolvable:$true] %s16
      %s18 = sshll.u32 [#allocation2], 4
      %s19 = int_to_ptr.vmem [resolvable:$true] %s18
      %24 = dma.hbm_to_vmem [thread:$0]  %s17, 2048, %s19, [#allocation3], 128, 128, 8
    $region5: #{tpu_custom_call.1} parent=1 // pred_fallthru
      _
    // Predicated region
    $region6: #{tpu_custom_call.1} parent=1 // pred_check
      _
    $region7: #{tpu_custom_call.1} parent=1 // pred_check_branch
      %26 = sbr.rel (0) target = $region9
    $region8: #{tpu_custom_call.1} parent=1 // pred_region
      %28 = vsyncadd [#allocation6], 0
      %s29 = sshll.u32 %s1, 4
      %s30 = int_to_ptr.hbm [resolvable:$true] %s29
      %s31 = sshll.u32 [#allocation5], 4
      %s32 = int_to_ptr.vmem [resolvable:$true] %s31
      %37 = dma.hbm_to_vmem [thread:$0]  %s30, 512, %s32, [#allocation6], 128, 128, 8
    $region9: #{tpu_custom_call.1} parent=1 // pred_fallthru
      _
    // Predicated region
    $region10: #{tpu_custom_call.1} parent=1 // pred_check
      _
    $region11: #{tpu_custom_call.1} parent=1 // pred_check_branch
      %39 = sbr.rel (0) target = $region13
    $region12: #{tpu_custom_call.1} parent=1 // pred_region
      _
    $region13: #{tpu_custom_call.1} parent=1 // pred_fallthru
      _
    // Predicated region
    $region14: #{tpu_custom_call.1} parent=1 // pred_check
      _
    $region15: #{tpu_custom_call.1} parent=1 // pred_check_branch
      %41 = sbr.rel (0) target = $region17
    $region16: #{tpu_custom_call.1} parent=1 // pred_region
      %43 = vsyncadd [#allocation6], 0
      %s45 = sshll.u32 %s3, 4
      %s46 = int_to_ptr.hbm [resolvable:$true] %s45
      %s47 = sshll.u32 [#allocation7], 4
      %s48 = int_to_ptr.vmem [resolvable:$true] %s47
      %50 = dma.hbm_to_vmem [thread:$0]  %s46, 64, %s48, [#allocation6]
    $region17: #{tpu_custom_call.1} parent=1 // pred_fallthru
      _
    // Predicated region
    $region18: #{tpu_custom_call.1} parent=1 // pred_check
      _
    $region19: #{tpu_custom_call.1} parent=1 // pred_check_branch
      %52 = sbr.rel (0) target = $region21
    $region20: #{tpu_custom_call.1} parent=1 // pred_region
      %54 = dma.done [#allocation3], 2048
    $region21: #{tpu_custom_call.1} parent=1 // pred_fallthru
      _
    // Predicated region
    $region22: #{tpu_custom_call.1} parent=1 // pred_check
      _
    $region23: #{tpu_custom_call.1} parent=1 // pred_check_branch
      %56 = sbr.rel (0) target = $region25
    $region24: #{tpu_custom_call.1} parent=1 // pred_region
      %58 = dma.done [#allocation6], 512
    $region25: #{tpu_custom_call.1} parent=1 // pred_fallthru
      _
    // Predicated region
    $region26: #{tpu_custom_call.1} parent=1 // pred_check
      _
    $region27: #{tpu_custom_call.1} parent=1 // pred_check_branch
      %60 = sbr.rel (0) target = $region29
    $region28: #{tpu_custom_call.1} parent=1 // pred_region
      %62 = dma.done [#allocation6], 64
    $region29: #{tpu_custom_call.1} parent=1 // pred_fallthru
      _
    %v63 = vld [vmem:[#allocation2] sm:$0xff]
    %v64 = vld [vmem:[#allocation2 + $0x8] sm:$0xff]
    %v65 = vld [vmem:[#allocation2 + $0x10] sm:$0xff]
    %v66 = vld [vmem:[#allocation2 + $0x18] sm:$0xff]
    %v67 = vld [vmem:[#allocation2 + $0x20] sm:$0xff]
    %v68 = vld [vmem:[#allocation2 + $0x28] sm:$0xff]
    %v69 = vld [vmem:[#allocation2 + $0x30] sm:$0xff]
    %v70 = vld [vmem:[#allocation2 + $0x38] sm:$0xff]
    %v71 = vld [vmem:[#allocation2 + $0x40] sm:$0xff]
    %v72 = vld [vmem:[#allocation2 + $0x48] sm:$0xff]
    %v73 = vld [vmem:[#allocation2 + $0x50] sm:$0xff]
    %v74 = vld [vmem:[#allocation2 + $0x58] sm:$0xff]
    %v75 = vld [vmem:[#allocation2 + $0x60] sm:$0xff]
    %v76 = vld [vmem:[#allocation2 + $0x68] sm:$0xff]
    %v77 = vld [vmem:[#allocation2 + $0x70] sm:$0xff]
    %v78 = vld [vmem:[#allocation2 + $0x78] sm:$0xff]
    %v79 = vld [vmem:[#allocation5] sm:$0xff]
    %v80 = vld [vmem:[#allocation5 + $0x8] sm:$0xff]
    %v81 = vld [vmem:[#allocation5 + $0x10] sm:$0xff]
    %v82 = vld [vmem:[#allocation5 + $0x18] sm:$0xff]
    %v83 = vld [vmem:[%s2] sm:$0x1]
    %v85 = vperm.slane %v83, 0
    %vm87 = vcmask 261120
    %v89 = vsel %vm87, %v63, 0
    %v92 = vsel %vm87, %v64, 0
    %v95 = vsel %vm87, %v65, 0
    %v98 = vsel %vm87, %v66, 0
    %v101 = vsel %vm87, %v67, 0
    %v104 = vsel %vm87, %v68, 0
    %v107 = vsel %vm87, %v69, 0
    %v110 = vsel %vm87, %v70, 0
    %v113 = vsel %vm87, %v71, 0
    %v116 = vsel %vm87, %v72, 0
    %v119 = vsel %vm87, %v73, 0
    %v122 = vsel %vm87, %v74, 0
    %v125 = vsel %vm87, %v75, 0
    %v128 = vsel %vm87, %v76, 0
    %v131 = vsel %vm87, %v77, 0
    %v134 = vsel %vm87, %v78, 0
    %136 = vmatpush.msra.mxu0 0.0
    %137 = vmatpush.msra.mxu0 0.0
    %138 = vmatpush.msra.mxu0 0.0
    %139 = vmatpush.msra.mxu0 0.0
    %140 = vmatpush.msra.mxu0 0.0
    %141 = vmatpush.msra.mxu0 0.0
    %142 = vmatpush.msra.mxu0 0.0
    %143 = vmatpush.msra.mxu0 0.0
    %144 = vmatpush.msra.mxu0 0.0
    %145 = vmatpush.msra.mxu0 0.0
    %146 = vmatpush.msra.mxu0 0.0
    %147 = vmatpush.msra.mxu0 0.0
    %148 = vmatpush.msra.mxu0 %v82
    %149 = vmatpush.msra.mxu0 %v81
    %150 = vmatpush.msra.mxu0 %v80
    %151 = vmatpush.msra.mxu0 %v79
    %152 = vmatmul.f32.gmra.mxu0 %v89
    %v153 = vpop.f32.mrf.mxu0
    %v154 = vadd.f32 %v85, %v153
    %155 = vmatmul.f32.gmra.mxu0 %v92
    %v156 = vpop.f32.mrf.mxu0
    %v157 = vadd.f32 %v85, %v156
    %158 = vmatmul.f32.gmra.mxu0 %v95
    %v159 = vpop.f32.mrf.mxu0
    %v160 = vadd.f32 %v85, %v159
    %161 = vmatmul.f32.gmra.mxu0 %v98
    %v162 = vpop.f32.mrf.mxu0
    %v163 = vadd.f32 %v85, %v162
    %164 = vmatmul.f32.gmra.mxu0 %v101
    %v165 = vpop.f32.mrf.mxu0
    %v166 = vadd.f32 %v85, %v165
    %167 = vmatmul.f32.gmra.mxu0 %v104
    %v168 = vpop.f32.mrf.mxu0
    %v169 = vadd.f32 %v85, %v168
    %170 = vmatmul.f32.gmra.mxu0 %v107
    %v171 = vpop.f32.mrf.mxu0
    %v172 = vadd.f32 %v85, %v171
    %173 = vmatmul.f32.gmra.mxu0 %v110
    %v174 = vpop.f32.mrf.mxu0
    %v175 = vadd.f32 %v85, %v174
    %176 = vmatmul.f32.gmra.mxu0 %v113
    %v177 = vpop.f32.mrf.mxu0
    %v178 = vadd.f32 %v85, %v177
    %179 = vmatmul.f32.gmra.mxu0 %v116
    %v180 = vpop.f32.mrf.mxu0
    %v181 = vadd.f32 %v85, %v180
    %182 = vmatmul.f32.gmra.mxu0 %v119
    %v183 = vpop.f32.mrf.mxu0
    %v184 = vadd.f32 %v85, %v183
    %185 = vmatmul.f32.gmra.mxu0 %v122
    %v186 = vpop.f32.mrf.mxu0
    %v187 = vadd.f32 %v85, %v186
    %188 = vmatmul.f32.gmra.mxu0 %v125
    %v189 = vpop.f32.mrf.mxu0
    %v190 = vadd.f32 %v85, %v189
    %191 = vmatmul.f32.gmra.mxu0 %v128
    %v192 = vpop.f32.mrf.mxu0
    %v193 = vadd.f32 %v85, %v192
    %194 = vmatmul.f32.gmra.mxu0 %v131
    %v195 = vpop.f32.mrf.mxu0
    %v196 = vadd.f32 %v85, %v195
    %197 = vmatmul.f32.gmra.mxu0 %v134
    %v198 = vpop.f32.mrf.mxu0
    %v199 = vadd.f32 %v85, %v198
    %200 = vdwg.mxu0
    %v201 = vtanh.pop %v154
    %v202 = vtanh.pop %v157
    %v203 = vtanh.pop %v160
    %v204 = vtanh.pop %v163
    %v205 = vtanh.pop %v166
    %v206 = vtanh.pop %v169
    %v207 = vtanh.pop %v172
    %v208 = vtanh.pop %v175
    %v209 = vtanh.pop %v178
    %v210 = vtanh.pop %v181
    %v211 = vtanh.pop %v184
    %v212 = vtanh.pop %v187
    %v213 = vtanh.pop %v190
    %v214 = vtanh.pop %v193
    %v215 = vtanh.pop %v196
    %v216 = vtanh.pop %v199
    %218 = vrot.lane.b32.xlu0 %v201, 96
    %v219 = vpop.permute.xlu0 %218
    %v220 = vsel %vm87, %v201, 0
    %v222 = vsel %vm87, %v219, 0
    %224 = vmatpush.xpose.msra.mxu0 0.0
    %225 = vmatpush.xpose.msra.mxu0 0.0
    %226 = vmatpush.xpose.msra.mxu0 0.0
    %227 = vmatpush.xpose.msra.mxu0 0.0
    %228 = vmatpush.xpose.msra.mxu0 0.0
    %229 = vmatpush.xpose.msra.mxu0 0.0
    %230 = vmatpush.xpose.msra.mxu0 0.0
    %231 = vmatpush.xpose.msra.mxu0 0.0
    %232 = vmatpush.xpose.msra.mxu0 0.0
    %233 = vmatpush.xpose.msra.mxu0 0.0
    %234 = vmatpush.xpose.msra.mxu0 0.0
    %235 = vmatpush.xpose.msra.mxu0 0.0
    %236 = vmatpush.xpose.msra.mxu0 0.0
    %237 = vmatpush.xpose.msra.mxu0 0.0
    %238 = vmatpush.xpose.msra.mxu0 0.0
    %239 = vmatpush.xpose.msra.mxu0 %v222
    %240 = vmatmul.f32.gmra.mxu0 %v220
    %v241 = vpop.f32.mrf.mxu0
    %v242 = vadd.f32 0.0, %v241
    %243 = vdwg.mxu0
    %245 = vrot.lane.b32.xlu0 %v202, 96
    %v246 = vpop.permute.xlu0 %245
    %v247 = vsel %vm87, %v202, 0
    %v249 = vsel %vm87, %v246, 0
    %251 = vmatpush.xpose.msra.mxu0 0.0
    %252 = vmatpush.xpose.msra.mxu0 0.0
    %253 = vmatpush.xpose.msra.mxu0 0.0
    %254 = vmatpush.xpose.msra.mxu0 0.0
    %255 = vmatpush.xpose.msra.mxu0 0.0
    %256 = vmatpush.xpose.msra.mxu0 0.0
    %257 = vmatpush.xpose.msra.mxu0 0.0
    %258 = vmatpush.xpose.msra.mxu0 0.0
    %259 = vmatpush.xpose.msra.mxu0 0.0
    %260 = vmatpush.xpose.msra.mxu0 0.0
    %261 = vmatpush.xpose.msra.mxu0 0.0
    %262 = vmatpush.xpose.msra.mxu0 0.0
    %263 = vmatpush.xpose.msra.mxu0 0.0
    %264 = vmatpush.xpose.msra.mxu0 0.0
    %265 = vmatpush.xpose.msra.mxu0 0.0
    %266 = vmatpush.xpose.msra.mxu0 %v249
    %267 = vmatmul.f32.gmra.mxu0 %v247
    %v268 = vpop.f32.mrf.mxu0
    %v269 = vadd.f32 0.0, %v268
    %270 = vdwg.mxu0
    %272 = vrot.lane.b32.xlu0 %v203, 96
    %v273 = vpop.permute.xlu0 %272
    %v274 = vsel %vm87, %v203, 0
    %v276 = vsel %vm87, %v273, 0
    %278 = vmatpush.xpose.msra.mxu0 0.0
    %279 = vmatpush.xpose.msra.mxu0 0.0
    %280 = vmatpush.xpose.msra.mxu0 0.0
    %281 = vmatpush.xpose.msra.mxu0 0.0
    %282 = vmatpush.xpose.msra.mxu0 0.0
    %283 = vmatpush.xpose.msra.mxu0 0.0
    %284 = vmatpush.xpose.msra.mxu0 0.0
    %285 = vmatpush.xpose.msra.mxu0 0.0
    %286 = vmatpush.xpose.msra.mxu0 0.0
    %287 = vmatpush.xpose.msra.mxu0 0.0
    %288 = vmatpush.xpose.msra.mxu0 0.0
    %289 = vmatpush.xpose.msra.mxu0 0.0
    %290 = vmatpush.xpose.msra.mxu0 0.0
    %291 = vmatpush.xpose.msra.mxu0 0.0
    %292 = vmatpush.xpose.msra.mxu0 0.0
    %293 = vmatpush.xpose.msra.mxu0 %v276
    %294 = vmatmul.f32.gmra.mxu0 %v274
    %v295 = vpop.f32.mrf.mxu0
    %v296 = vadd.f32 0.0, %v295
    %297 = vdwg.mxu0
    %299 = vrot.lane.b32.xlu0 %v204, 96
    %v300 = vpop.permute.xlu0 %299
    %v301 = vsel %vm87, %v204, 0
    %v303 = vsel %vm87, %v300, 0
    %305 = vmatpush.xpose.msra.mxu0 0.0
    %306 = vmatpush.xpose.msra.mxu0 0.0
    %307 = vmatpush.xpose.msra.mxu0 0.0
    %308 = vmatpush.xpose.msra.mxu0 0.0
    %309 = vmatpush.xpose.msra.mxu0 0.0
    %310 = vmatpush.xpose.msra.mxu0 0.0
    %311 = vmatpush.xpose.msra.mxu0 0.0
    %312 = vmatpush.xpose.msra.mxu0 0.0
    %313 = vmatpush.xpose.msra.mxu0 0.0
    %314 = vmatpush.xpose.msra.mxu0 0.0
    %315 = vmatpush.xpose.msra.mxu0 0.0
    %316 = vmatpush.xpose.msra.mxu0 0.0
    %317 = vmatpush.xpose.msra.mxu0 0.0
    %318 = vmatpush.xpose.msra.mxu0 0.0
    %319 = vmatpush.xpose.msra.mxu0 0.0
    %320 = vmatpush.xpose.msra.mxu0 %v303
    %321 = vmatmul.f32.gmra.mxu0 %v301
    %v322 = vpop.f32.mrf.mxu0
    %v323 = vadd.f32 0.0, %v322
    %324 = vdwg.mxu0
    %326 = vrot.lane.b32.xlu0 %v205, 96
    %v327 = vpop.permute.xlu0 %326
    %v328 = vsel %vm87, %v205, 0
    %v330 = vsel %vm87, %v327, 0
    %332 = vmatpush.xpose.msra.mxu0 0.0
    %333 = vmatpush.xpose.msra.mxu0 0.0
    %334 = vmatpush.xpose.msra.mxu0 0.0
    %335 = vmatpush.xpose.msra.mxu0 0.0
    %336 = vmatpush.xpose.msra.mxu0 0.0
    %337 = vmatpush.xpose.msra.mxu0 0.0
    %338 = vmatpush.xpose.msra.mxu0 0.0
    %339 = vmatpush.xpose.msra.mxu0 0.0
    %340 = vmatpush.xpose.msra.mxu0 0.0
    %341 = vmatpush.xpose.msra.mxu0 0.0
    %342 = vmatpush.xpose.msra.mxu0 0.0
    %343 = vmatpush.xpose.msra.mxu0 0.0
    %344 = vmatpush.xpose.msra.mxu0 0.0
    %345 = vmatpush.xpose.msra.mxu0 0.0
    %346 = vmatpush.xpose.msra.mxu0 0.0
    %347 = vmatpush.xpose.msra.mxu0 %v330
    %348 = vmatmul.f32.gmra.mxu0 %v328
    %v349 = vpop.f32.mrf.mxu0
    %v350 = vadd.f32 0.0, %v349
    %351 = vdwg.mxu0
    %353 = vrot.lane.b32.xlu0 %v206, 96
    %v354 = vpop.permute.xlu0 %353
    %v355 = vsel %vm87, %v206, 0
    %v357 = vsel %vm87, %v354, 0
    %359 = vmatpush.xpose.msra.mxu0 0.0
    %360 = vmatpush.xpose.msra.mxu0 0.0
    %361 = vmatpush.xpose.msra.mxu0 0.0
    %362 = vmatpush.xpose.msra.mxu0 0.0
    %363 = vmatpush.xpose.msra.mxu0 0.0
    %364 = vmatpush.xpose.msra.mxu0 0.0
    %365 = vmatpush.xpose.msra.mxu0 0.0
    %366 = vmatpush.xpose.msra.mxu0 0.0
    %367 = vmatpush.xpose.msra.mxu0 0.0
    %368 = vmatpush.xpose.msra.mxu0 0.0
    %369 = vmatpush.xpose.msra.mxu0 0.0
    %370 = vmatpush.xpose.msra.mxu0 0.0
    %371 = vmatpush.xpose.msra.mxu0 0.0
    %372 = vmatpush.xpose.msra.mxu0 0.0
    %373 = vmatpush.xpose.msra.mxu0 0.0
    %374 = vmatpush.xpose.msra.mxu0 %v357
    %375 = vmatmul.f32.gmra.mxu0 %v355
    %v376 = vpop.f32.mrf.mxu0
    %v377 = vadd.f32 0.0, %v376
    %378 = vdwg.mxu0
    %380 = vrot.lane.b32.xlu0 %v207, 96
    %v381 = vpop.permute.xlu0 %380
    %v382 = vsel %vm87, %v207, 0
    %v384 = vsel %vm87, %v381, 0
    %386 = vmatpush.xpose.msra.mxu0 0.0
    %387 = vmatpush.xpose.msra.mxu0 0.0
    %388 = vmatpush.xpose.msra.mxu0 0.0
    %389 = vmatpush.xpose.msra.mxu0 0.0
    %390 = vmatpush.xpose.msra.mxu0 0.0
    %391 = vmatpush.xpose.msra.mxu0 0.0
    %392 = vmatpush.xpose.msra.mxu0 0.0
    %393 = vmatpush.xpose.msra.mxu0 0.0
    %394 = vmatpush.xpose.msra.mxu0 0.0
    %395 = vmatpush.xpose.msra.mxu0 0.0
    %396 = vmatpush.xpose.msra.mxu0 0.0
    %397 = vmatpush.xpose.msra.mxu0 0.0
    %398 = vmatpush.xpose.msra.mxu0 0.0
    %399 = vmatpush.xpose.msra.mxu0 0.0
    %400 = vmatpush.xpose.msra.mxu0 0.0
    %401 = vmatpush.xpose.msra.mxu0 %v384
    %402 = vmatmul.f32.gmra.mxu0 %v382
    %v403 = vpop.f32.mrf.mxu0
    %v404 = vadd.f32 0.0, %v403
    %405 = vdwg.mxu0
    %407 = vrot.lane.b32.xlu0 %v208, 96
    %v408 = vpop.permute.xlu0 %407
    %v409 = vsel %vm87, %v208, 0
    %v411 = vsel %vm87, %v408, 0
    %413 = vmatpush.xpose.msra.mxu0 0.0
    %414 = vmatpush.xpose.msra.mxu0 0.0
    %415 = vmatpush.xpose.msra.mxu0 0.0
    %416 = vmatpush.xpose.msra.mxu0 0.0
    %417 = vmatpush.xpose.msra.mxu0 0.0
    %418 = vmatpush.xpose.msra.mxu0 0.0
    %419 = vmatpush.xpose.msra.mxu0 0.0
    %420 = vmatpush.xpose.msra.mxu0 0.0
    %421 = vmatpush.xpose.msra.mxu0 0.0
    %422 = vmatpush.xpose.msra.mxu0 0.0
    %423 = vmatpush.xpose.msra.mxu0 0.0
    %424 = vmatpush.xpose.msra.mxu0 0.0
    %425 = vmatpush.xpose.msra.mxu0 0.0
    %426 = vmatpush.xpose.msra.mxu0 0.0
    %427 = vmatpush.xpose.msra.mxu0 0.0
    %428 = vmatpush.xpose.msra.mxu0 %v411
    %429 = vmatmul.f32.gmra.mxu0 %v409
    %v430 = vpop.f32.mrf.mxu0
    %v431 = vadd.f32 0.0, %v430
    %432 = vdwg.mxu0
    %434 = vrot.lane.b32.xlu0 %v209, 96
    %v435 = vpop.permute.xlu0 %434
    %v436 = vsel %vm87, %v209, 0
    %v438 = vsel %vm87, %v435, 0
    %440 = vmatpush.xpose.msra.mxu0 0.0
    %441 = vmatpush.xpose.msra.mxu0 0.0
    %442 = vmatpush.xpose.msra.mxu0 0.0
    %443 = vmatpush.xpose.msra.mxu0 0.0
    %444 = vmatpush.xpose.msra.mxu0 0.0
    %445 = vmatpush.xpose.msra.mxu0 0.0
    %446 = vmatpush.xpose.msra.mxu0 0.0
    %447 = vmatpush.xpose.msra.mxu0 0.0
    %448 = vmatpush.xpose.msra.mxu0 0.0
    %449 = vmatpush.xpose.msra.mxu0 0.0
    %450 = vmatpush.xpose.msra.mxu0 0.0
    %451 = vmatpush.xpose.msra.mxu0 0.0
    %452 = vmatpush.xpose.msra.mxu0 0.0
    %453 = vmatpush.xpose.msra.mxu0 0.0
    %454 = vmatpush.xpose.msra.mxu0 0.0
    %455 = vmatpush.xpose.msra.mxu0 %v438
    %456 = vmatmul.f32.gmra.mxu0 %v436
    %v457 = vpop.f32.mrf.mxu0
    %v458 = vadd.f32 0.0, %v457
    %459 = vdwg.mxu0
    %461 = vrot.lane.b32.xlu0 %v210, 96
    %v462 = vpop.permute.xlu0 %461
    %v463 = vsel %vm87, %v210, 0
    %v465 = vsel %vm87, %v462, 0
    %467 = vmatpush.xpose.msra.mxu0 0.0
    %468 = vmatpush.xpose.msra.mxu0 0.0
    %469 = vmatpush.xpose.msra.mxu0 0.0
    %470 = vmatpush.xpose.msra.mxu0 0.0
    %471 = vmatpush.xpose.msra.mxu0 0.0
    %472 = vmatpush.xpose.msra.mxu0 0.0
    %473 = vmatpush.xpose.msra.mxu0 0.0
    %474 = vmatpush.xpose.msra.mxu0 0.0
    %475 = vmatpush.xpose.msra.mxu0 0.0
    %476 = vmatpush.xpose.msra.mxu0 0.0
    %477 = vmatpush.xpose.msra.mxu0 0.0
    %478 = vmatpush.xpose.msra.mxu0 0.0
    %479 = vmatpush.xpose.msra.mxu0 0.0
    %480 = vmatpush.xpose.msra.mxu0 0.0
    %481 = vmatpush.xpose.msra.mxu0 0.0
    %482 = vmatpush.xpose.msra.mxu0 %v465
    %483 = vmatmul.f32.gmra.mxu0 %v463
    %v484 = vpop.f32.mrf.mxu0
    %v485 = vadd.f32 0.0, %v484
    %486 = vdwg.mxu0
    %488 = vrot.lane.b32.xlu0 %v211, 96
    %v489 = vpop.permute.xlu0 %488
    %v490 = vsel %vm87, %v211, 0
    %v492 = vsel %vm87, %v489, 0
    %494 = vmatpush.xpose.msra.mxu0 0.0
    %495 = vmatpush.xpose.msra.mxu0 0.0
    %496 = vmatpush.xpose.msra.mxu0 0.0
    %497 = vmatpush.xpose.msra.mxu0 0.0
    %498 = vmatpush.xpose.msra.mxu0 0.0
    %499 = vmatpush.xpose.msra.mxu0 0.0
    %500 = vmatpush.xpose.msra.mxu0 0.0
    %501 = vmatpush.xpose.msra.mxu0 0.0
    %502 = vmatpush.xpose.msra.mxu0 0.0
    %503 = vmatpush.xpose.msra.mxu0 0.0
    %504 = vmatpush.xpose.msra.mxu0 0.0
    %505 = vmatpush.xpose.msra.mxu0 0.0
    %506 = vmatpush.xpose.msra.mxu0 0.0
    %507 = vmatpush.xpose.msra.mxu0 0.0
    %508 = vmatpush.xpose.msra.mxu0 0.0
    %509 = vmatpush.xpose.msra.mxu0 %v492
    %510 = vmatmul.f32.gmra.mxu0 %v490
    %v511 = vpop.f32.mrf.mxu0
    %v512 = vadd.f32 0.0, %v511
    %513 = vdwg.mxu0
    %515 = vrot.lane.b32.xlu0 %v212, 96
    %v516 = vpop.permute.xlu0 %515
    %v517 = vsel %vm87, %v212, 0
    %v519 = vsel %vm87, %v516, 0
    %521 = vmatpush.xpose.msra.mxu0 0.0
    %522 = vmatpush.xpose.msra.mxu0 0.0
    %523 = vmatpush.xpose.msra.mxu0 0.0
    %524 = vmatpush.xpose.msra.mxu0 0.0
    %525 = vmatpush.xpose.msra.mxu0 0.0
    %526 = vmatpush.xpose.msra.mxu0 0.0
    %527 = vmatpush.xpose.msra.mxu0 0.0
    %528 = vmatpush.xpose.msra.mxu0 0.0
    %529 = vmatpush.xpose.msra.mxu0 0.0
    %530 = vmatpush.xpose.msra.mxu0 0.0
    %531 = vmatpush.xpose.msra.mxu0 0.0
    %532 = vmatpush.xpose.msra.mxu0 0.0
    %533 = vmatpush.xpose.msra.mxu0 0.0
    %534 = vmatpush.xpose.msra.mxu0 0.0
    %535 = vmatpush.xpose.msra.mxu0 0.0
    %536 = vmatpush.xpose.msra.mxu0 %v519
    %537 = vmatmul.f32.gmra.mxu0 %v517
    %v538 = vpop.f32.mrf.mxu0
    %v539 = vadd.f32 0.0, %v538
    %540 = vdwg.mxu0
    %542 = vrot.lane.b32.xlu0 %v213, 96
    %v543 = vpop.permute.xlu0 %542
    %v544 = vsel %vm87, %v213, 0
    %v546 = vsel %vm87, %v543, 0
    %548 = vmatpush.xpose.msra.mxu0 0.0
    %549 = vmatpush.xpose.msra.mxu0 0.0
    %550 = vmatpush.xpose.msra.mxu0 0.0
    %551 = vmatpush.xpose.msra.mxu0 0.0
    %552 = vmatpush.xpose.msra.mxu0 0.0
    %553 = vmatpush.xpose.msra.mxu0 0.0
    %554 = vmatpush.xpose.msra.mxu0 0.0
    %555 = vmatpush.xpose.msra.mxu0 0.0
    %556 = vmatpush.xpose.msra.mxu0 0.0
    %557 = vmatpush.xpose.msra.mxu0 0.0
    %558 = vmatpush.xpose.msra.mxu0 0.0
    %559 = vmatpush.xpose.msra.mxu0 0.0
    %560 = vmatpush.xpose.msra.mxu0 0.0
    %561 = vmatpush.xpose.msra.mxu0 0.0
    %562 = vmatpush.xpose.msra.mxu0 0.0
    %563 = vmatpush.xpose.msra.mxu0 %v546
    %564 = vmatmul.f32.gmra.mxu0 %v544
    %v565 = vpop.f32.mrf.mxu0
    %v566 = vadd.f32 0.0, %v565
    %567 = vdwg.mxu0
    %569 = vrot.lane.b32.xlu0 %v214, 96
    %v570 = vpop.permute.xlu0 %569
    %v571 = vsel %vm87, %v214, 0
    %v573 = vsel %vm87, %v570, 0
    %575 = vmatpush.xpose.msra.mxu0 0.0
    %576 = vmatpush.xpose.msra.mxu0 0.0
    %577 = vmatpush.xpose.msra.mxu0 0.0
    %578 = vmatpush.xpose.msra.mxu0 0.0
    %579 = vmatpush.xpose.msra.mxu0 0.0
    %580 = vmatpush.xpose.msra.mxu0 0.0
    %581 = vmatpush.xpose.msra.mxu0 0.0
    %582 = vmatpush.xpose.msra.mxu0 0.0
    %583 = vmatpush.xpose.msra.mxu0 0.0
    %584 = vmatpush.xpose.msra.mxu0 0.0
    %585 = vmatpush.xpose.msra.mxu0 0.0
    %586 = vmatpush.xpose.msra.mxu0 0.0
    %587 = vmatpush.xpose.msra.mxu0 0.0
    %588 = vmatpush.xpose.msra.mxu0 0.0
    %589 = vmatpush.xpose.msra.mxu0 0.0
    %590 = vmatpush.xpose.msra.mxu0 %v573
    %591 = vmatmul.f32.gmra.mxu0 %v571
    %v592 = vpop.f32.mrf.mxu0
    %v593 = vadd.f32 0.0, %v592
    %594 = vdwg.mxu0
    %596 = vrot.lane.b32.xlu0 %v215, 96
    %v597 = vpop.permute.xlu0 %596
    %v598 = vsel %vm87, %v215, 0
    %v600 = vsel %vm87, %v597, 0
    %602 = vmatpush.xpose.msra.mxu0 0.0
    %603 = vmatpush.xpose.msra.mxu0 0.0
    %604 = vmatpush.xpose.msra.mxu0 0.0
    %605 = vmatpush.xpose.msra.mxu0 0.0
    %606 = vmatpush.xpose.msra.mxu0 0.0
    %607 = vmatpush.xpose.msra.mxu0 0.0
    %608 = vmatpush.xpose.msra.mxu0 0.0
    %609 = vmatpush.xpose.msra.mxu0 0.0
    %610 = vmatpush.xpose.msra.mxu0 0.0
    %611 = vmatpush.xpose.msra.mxu0 0.0
    %612 = vmatpush.xpose.msra.mxu0 0.0
    %613 = vmatpush.xpose.msra.mxu0 0.0
    %614 = vmatpush.xpose.msra.mxu0 0.0
    %615 = vmatpush.xpose.msra.mxu0 0.0
    %616 = vmatpush.xpose.msra.mxu0 0.0
    %617 = vmatpush.xpose.msra.mxu0 %v600
    %618 = vmatmul.f32.gmra.mxu0 %v598
    %v619 = vpop.f32.mrf.mxu0
    %v620 = vadd.f32 0.0, %v619
    %621 = vdwg.mxu0
    %623 = vrot.lane.b32.xlu0 %v216, 96
    %v624 = vpop.permute.xlu0 %623
    %v625 = vsel %vm87, %v216, 0
    %v627 = vsel %vm87, %v624, 0
    %629 = vmatpush.xpose.msra.mxu0 0.0
    %630 = vmatpush.xpose.msra.mxu0 0.0
    %631 = vmatpush.xpose.msra.mxu0 0.0
    %632 = vmatpush.xpose.msra.mxu0 0.0
    %633 = vmatpush.xpose.msra.mxu0 0.0
    %634 = vmatpush.xpose.msra.mxu0 0.0
    %635 = vmatpush.xpose.msra.mxu0 0.0
    %636 = vmatpush.xpose.msra.mxu0 0.0
    %637 = vmatpush.xpose.msra.mxu0 0.0
    %638 = vmatpush.xpose.msra.mxu0 0.0
    %639 = vmatpush.xpose.msra.mxu0 0.0
    %640 = vmatpush.xpose.msra.mxu0 0.0
    %641 = vmatpush.xpose.msra.mxu0 0.0
    %642 = vmatpush.xpose.msra.mxu0 0.0
    %643 = vmatpush.xpose.msra.mxu0 0.0
    %644 = vmatpush.xpose.msra.mxu0 %v627
    %645 = vmatmul.f32.gmra.mxu0 %v625
    %v646 = vpop.f32.mrf.mxu0
    %v647 = vadd.f32 0.0, %v646
    %648 = vdwg.mxu0
    %vm649 = vcmask 64512
    %v650 = vsel %vm649, %v242, -inf
    %651 = vmax.xlane.f32.xlu0 %v650
    %v652 = vpop.xlane.xlu0 %651
    %v653 = vsel %vm649, %v269, -inf
    %654 = vmax.xlane.f32.xlu0 %v653
    %v655 = vpop.xlane.xlu0 %654
    %v656 = vsel %vm649, %v296, -inf
    %657 = vmax.xlane.f32.xlu0 %v656
    %v658 = vpop.xlane.xlu0 %657
    %v659 = vsel %vm649, %v323, -inf
    %660 = vmax.xlane.f32.xlu0 %v659
    %v661 = vpop.xlane.xlu0 %660
    %v662 = vsel %vm649, %v350, -inf
    %663 = vmax.xlane.f32.xlu0 %v662
    %v664 = vpop.xlane.xlu0 %663
    %v665 = vsel %vm649, %v377, -inf
    %666 = vmax.xlane.f32.xlu0 %v665
    %v667 = vpop.xlane.xlu0 %666
    %v668 = vsel %vm649, %v404, -inf
    %669 = vmax.xlane.f32.xlu0 %v668
    %v670 = vpop.xlane.xlu0 %669
    %v671 = vsel %vm649, %v431, -inf
    %672 = vmax.xlane.f32.xlu0 %v671
    %v673 = vpop.xlane.xlu0 %672
    %v674 = vsel %vm649, %v458, -inf
    %675 = vmax.xlane.f32.xlu0 %v674
    %v676 = vpop.xlane.xlu0 %675
    %v677 = vsel %vm649, %v485, -inf
    %678 = vmax.xlane.f32.xlu0 %v677
    %v679 = vpop.xlane.xlu0 %678
    %v680 = vsel %vm649, %v512, -inf
    %681 = vmax.xlane.f32.xlu0 %v680
    %v682 = vpop.xlane.xlu0 %681
    %v683 = vsel %vm649, %v539, -inf
    %684 = vmax.xlane.f32.xlu0 %v683
    %v685 = vpop.xlane.xlu0 %684
    %v686 = vsel %vm649, %v566, -inf
    %687 = vmax.xlane.f32.xlu0 %v686
    %v688 = vpop.xlane.xlu0 %687
    %v689 = vsel %vm649, %v593, -inf
    %690 = vmax.xlane.f32.xlu0 %v689
    %v691 = vpop.xlane.xlu0 %690
    %v692 = vsel %vm649, %v620, -inf
    %693 = vmax.xlane.f32.xlu0 %v692
    %v694 = vpop.xlane.xlu0 %693
    %v695 = vsel %vm649, %v647, -inf
    %696 = vmax.xlane.f32.xlu0 %v695
    %v697 = vpop.xlane.xlu0 %696
    %v698 = vsub.f32 %v242, %v652
    %v699 = vsub.f32 %v269, %v655
    %v700 = vsub.f32 %v296, %v658
    %v701 = vsub.f32 %v323, %v661
    %v702 = vsub.f32 %v350, %v664
    %v703 = vsub.f32 %v377, %v667
    %v704 = vsub.f32 %v404, %v670
    %v705 = vsub.f32 %v431, %v673
    %v706 = vsub.f32 %v458, %v676
    %v707 = vsub.f32 %v485, %v679
    %v708 = vsub.f32 %v512, %v682
    %v709 = vsub.f32 %v539, %v685
    %v710 = vsub.f32 %v566, %v688
    %v711 = vsub.f32 %v593, %v691
    %v712 = vsub.f32 %v620, %v694
    %v713 = vsub.f32 %v647, %v697
    %v714 = vmul.f32 %v698, 1.442695
    %v715 = vpow.pop %v714
    %v716 = vmul.f32 %v699, 1.442695
    %v717 = vpow.pop %v716
    %v718 = vmul.f32 %v700, 1.442695
    %v719 = vpow.pop %v718
    %v720 = vmul.f32 %v701, 1.442695
    %v721 = vpow.pop %v720
    %v722 = vmul.f32 %v702, 1.442695
    %v723 = vpow.pop %v722
    %v724 = vmul.f32 %v703, 1.442695
    %v725 = vpow.pop %v724
    %v726 = vmul.f32 %v704, 1.442695
    %v727 = vpow.pop %v726
    %v728 = vmul.f32 %v705, 1.442695
    %v729 = vpow.pop %v728
    %v730 = vmul.f32 %v706, 1.442695
    %v731 = vpow.pop %v730
    %v732 = vmul.f32 %v707, 1.442695
    %v733 = vpow.pop %v732
    %v734 = vmul.f32 %v708, 1.442695
    %v735 = vpow.pop %v734
    %v736 = vmul.f32 %v709, 1.442695
    %v737 = vpow.pop %v736
    %v738 = vmul.f32 %v710, 1.442695
    %v739 = vpow.pop %v738
    %v740 = vmul.f32 %v711, 1.442695
    %v741 = vpow.pop %v740
    %v742 = vmul.f32 %v712, 1.442695
    %v743 = vpow.pop %v742
    %v744 = vmul.f32 %v713, 1.442695
    %v745 = vpow.pop %v744
    %v746 = vlaneseq
    %v747 = vshrl.u32 %v746, 7
    %v748 = vlaneseq
    %v749 = vand.u32 %v748, 127
    %vm750 = vcmp.le.s32.totalorder %v747, %v749
    %v751 = vsel %vm750, 1, 0
    %v752 = vcvt.s32.f32 %v751
    %vm753 = vcmp.ge.s32.totalorder %v747, %v749
    %v754 = vsel %vm753, 1, 0
    %v755 = vcvt.s32.f32 %v754
    %vm756 = vcmp.eq.s32.totalorder %v747, %v749
    %v757 = vsel %vm756, 1, 0
    %v758 = vcvt.s32.f32 %v757
    %vm759 = vcmp.lt.s32.totalorder %v749, 7
    %v760 = vsel %vm759, 1, 0
    %v761 = vcvt.s32.f32 %v760
    %v763 = vsel %vm649, %v715, 0
    %v766 = vsel %vm649, %v717, 0
    %v769 = vsel %vm649, %v719, 0
    %v772 = vsel %vm649, %v721, 0
    %v775 = vsel %vm649, %v723, 0
    %v778 = vsel %vm649, %v725, 0
    %v781 = vsel %vm649, %v727, 0
    %v784 = vsel %vm649, %v729, 0
    %v787 = vsel %vm649, %v731, 0
    %v790 = vsel %vm649, %v733, 0
    %v793 = vsel %vm649, %v735, 0
    %v796 = vsel %vm649, %v737, 0
    %v799 = vsel %vm649, %v739, 0
    %v802 = vsel %vm649, %v741, 0
    %v805 = vsel %vm649, %v743, 0
    %v808 = vsel %vm649, %v745, 0
    %810 = vmatpush.msra.mxu0 0.0
    %811 = vmatpush.msra.mxu0 0.0
    %812 = vmatpush.msra.mxu0 0.0
    %813 = vmatpush.msra.mxu0 0.0
    %814 = vmatpush.msra.mxu0 0.0
    %815 = vmatpush.msra.mxu0 0.0
    %816 = vmatpush.msra.mxu0 0.0
    %817 = vmatpush.msra.mxu0 0.0
    %818 = vmatpush.msra.mxu0 0.0
    %819 = vmatpush.msra.mxu0 0.0
    %820 = vmatpush.msra.mxu0 0.0
    %821 = vmatpush.msra.mxu0 0.0
    %822 = vmatpush.msra.mxu0 0.0
    %823 = vmatpush.msra.mxu0 0.0
    %824 = vmatpush.msra.mxu0 0.0
    %825 = vmatpush.msra.mxu0 %v752
    %826 = vmatmul.f32.gmra.mxu0 %v763
    %v827 = vpop.f32.mrf.mxu0
    %v828 = vadd.f32 0.0, %v827
    %829 = vmatmul.f32.gmra.mxu0 %v766
    %v830 = vpop.f32.mrf.mxu0
    %v831 = vadd.f32 0.0, %v830
    %832 = vmatmul.f32.gmra.mxu0 %v769
    %v833 = vpop.f32.mrf.mxu0
    %v834 = vadd.f32 0.0, %v833
    %835 = vmatmul.f32.gmra.mxu0 %v772
    %v836 = vpop.f32.mrf.mxu0
    %v837 = vadd.f32 0.0, %v836
    %838 = vmatmul.f32.gmra.mxu0 %v775
    %v839 = vpop.f32.mrf.mxu0
    %v840 = vadd.f32 0.0, %v839
    %841 = vmatmul.f32.gmra.mxu0 %v778
    %v842 = vpop.f32.mrf.mxu0
    %v843 = vadd.f32 0.0, %v842
    %844 = vmatmul.f32.gmra.mxu0 %v781
    %v845 = vpop.f32.mrf.mxu0
    %v846 = vadd.f32 0.0, %v845
    %847 = vmatmul.f32.gmra.mxu0 %v784
    %v848 = vpop.f32.mrf.mxu0
    %v849 = vadd.f32 0.0, %v848
    %850 = vmatmul.f32.gmra.mxu0 %v787
    %v851 = vpop.f32.mrf.mxu0
    %v852 = vadd.f32 0.0, %v851
    %853 = vmatmul.f32.gmra.mxu0 %v790
    %v854 = vpop.f32.mrf.mxu0
    %v855 = vadd.f32 0.0, %v854
    %856 = vmatmul.f32.gmra.mxu0 %v793
    %v857 = vpop.f32.mrf.mxu0
    %v858 = vadd.f32 0.0, %v857
    %859 = vmatmul.f32.gmra.mxu0 %v796
    %v860 = vpop.f32.mrf.mxu0
    %v861 = vadd.f32 0.0, %v860
    %862 = vmatmul.f32.gmra.mxu0 %v799
    %v863 = vpop.f32.mrf.mxu0
    %v864 = vadd.f32 0.0, %v863
    %865 = vmatmul.f32.gmra.mxu0 %v802
    %v866 = vpop.f32.mrf.mxu0
    %v867 = vadd.f32 0.0, %v866
    %868 = vmatmul.f32.gmra.mxu0 %v805
    %v869 = vpop.f32.mrf.mxu0
    %v870 = vadd.f32 0.0, %v869
    %871 = vmatmul.f32.gmra.mxu0 %v808
    %v872 = vpop.f32.mrf.mxu0
    %v873 = vadd.f32 0.0, %v872
    %874 = vdwg.mxu0
    %v875 = vrcp.pop %v828
    %v876 = vmul.f32 %v828, %v875
    %v877 = vsub.f32 1.0, %v876
    %v878 = vmul.f32 %v875, %v877
    %v879 = vadd.f32 %v875, %v878
    %vm880 = vweird.f32 %v828
    %vm881 = vweird.f32 %v875
    %vm882 = vmor %vm880, %vm881
    %v883 = vsel %vm882, %v875, %v879
    %v884 = vand.u32 2147483647, %v828
    %vm885 = vcmp.eq.f32.partialorder %v884, 8.507059e+37
    %v886 = vand.u32 %v828, 2147483648
    %v887 = vor.u32 1.1754944e-38, %v886
    %v888 = vsel %vm885, %v887, %v883
    %v889 = vrcp.pop %v831
    %v890 = vmul.f32 %v831, %v889
    %v891 = vsub.f32 1.0, %v890
    %v892 = vmul.f32 %v889, %v891
    %v893 = vadd.f32 %v889, %v892
    %vm894 = vweird.f32 %v831
    %vm895 = vweird.f32 %v889
    %vm896 = vmor %vm894, %vm895
    %v897 = vsel %vm896, %v889, %v893
    %v898 = vand.u32 2147483647, %v831
    %vm899 = vcmp.eq.f32.partialorder %v898, 8.507059e+37
    %v900 = vand.u32 %v831, 2147483648
    %v901 = vor.u32 1.1754944e-38, %v900
    %v902 = vsel %vm899, %v901, %v897
    %v903 = vrcp.pop %v834
    %v904 = vmul.f32 %v834, %v903
    %v905 = vsub.f32 1.0, %v904
    %v906 = vmul.f32 %v903, %v905
    %v907 = vadd.f32 %v903, %v906
    %vm908 = vweird.f32 %v834
    %vm909 = vweird.f32 %v903
    %vm910 = vmor %vm908, %vm909
    %v911 = vsel %vm910, %v903, %v907
    %v912 = vand.u32 2147483647, %v834
    %vm913 = vcmp.eq.f32.partialorder %v912, 8.507059e+37
    %v914 = vand.u32 %v834, 2147483648
    %v915 = vor.u32 1.1754944e-38, %v914
    %v916 = vsel %vm913, %v915, %v911
    %v917 = vrcp.pop %v837
    %v918 = vmul.f32 %v837, %v917
    %v919 = vsub.f32 1.0, %v918
    %v920 = vmul.f32 %v917, %v919
    %v921 = vadd.f32 %v917, %v920
    %vm922 = vweird.f32 %v837
    %vm923 = vweird.f32 %v917
    %vm924 = vmor %vm922, %vm923
    %v925 = vsel %vm924, %v917, %v921
    %v926 = vand.u32 2147483647, %v837
    %vm927 = vcmp.eq.f32.partialorder %v926, 8.507059e+37
    %v928 = vand.u32 %v837, 2147483648
    %v929 = vor.u32 1.1754944e-38, %v928
    %v930 = vsel %vm927, %v929, %v925
    %v931 = vrcp.pop %v840
    %v932 = vmul.f32 %v840, %v931
    %v933 = vsub.f32 1.0, %v932
    %v934 = vmul.f32 %v931, %v933
    %v935 = vadd.f32 %v931, %v934
    %vm936 = vweird.f32 %v840
    %vm937 = vweird.f32 %v931
    %vm938 = vmor %vm936, %vm937
    %v939 = vsel %vm938, %v931, %v935
    %v940 = vand.u32 2147483647, %v840
    %vm941 = vcmp.eq.f32.partialorder %v940, 8.507059e+37
    %v942 = vand.u32 %v840, 2147483648
    %v943 = vor.u32 1.1754944e-38, %v942
    %v944 = vsel %vm941, %v943, %v939
    %v945 = vrcp.pop %v843
    %v946 = vmul.f32 %v843, %v945
    %v947 = vsub.f32 1.0, %v946
    %v948 = vmul.f32 %v945, %v947
    %v949 = vadd.f32 %v945, %v948
    %vm950 = vweird.f32 %v843
    %vm951 = vweird.f32 %v945
    %vm952 = vmor %vm950, %vm951
    %v953 = vsel %vm952, %v945, %v949
    %v954 = vand.u32 2147483647, %v843
    %vm955 = vcmp.eq.f32.partialorder %v954, 8.507059e+37
    %v956 = vand.u32 %v843, 2147483648
    %v957 = vor.u32 1.1754944e-38, %v956
    %v958 = vsel %vm955, %v957, %v953
    %v959 = vrcp.pop %v846
    %v960 = vmul.f32 %v846, %v959
    %v961 = vsub.f32 1.0, %v960
    %v962 = vmul.f32 %v959, %v961
    %v963 = vadd.f32 %v959, %v962
    %vm964 = vweird.f32 %v846
    %vm965 = vweird.f32 %v959
    %vm966 = vmor %vm964, %vm965
    %v967 = vsel %vm966, %v959, %v963
    %v968 = vand.u32 2147483647, %v846
    %vm969 = vcmp.eq.f32.partialorder %v968, 8.507059e+37
    %v970 = vand.u32 %v846, 2147483648
    %v971 = vor.u32 1.1754944e-38, %v970
    %v972 = vsel %vm969, %v971, %v967
    %v973 = vrcp.pop %v849
    %v974 = vmul.f32 %v849, %v973
    %v975 = vsub.f32 1.0, %v974
    %v976 = vmul.f32 %v973, %v975
    %v977 = vadd.f32 %v973, %v976
    %vm978 = vweird.f32 %v849
    %vm979 = vweird.f32 %v973
    %vm980 = vmor %vm978, %vm979
    %v981 = vsel %vm980, %v973, %v977
    %v982 = vand.u32 2147483647, %v849
    %vm983 = vcmp.eq.f32.partialorder %v982, 8.507059e+37
    %v984 = vand.u32 %v849, 2147483648
    %v985 = vor.u32 1.1754944e-38, %v984
    %v986 = vsel %vm983, %v985, %v981
    %v987 = vrcp.pop %v852
    %v988 = vmul.f32 %v852, %v987
    %v989 = vsub.f32 1.0, %v988
    %v990 = vmul.f32 %v987, %v989
    %v991 = vadd.f32 %v987, %v990
    %vm992 = vweird.f32 %v852
    %vm993 = vweird.f32 %v987
    %vm994 = vmor %vm992, %vm993
    %v995 = vsel %vm994, %v987, %v991
    %v996 = vand.u32 2147483647, %v852
    %vm997 = vcmp.eq.f32.partialorder %v996, 8.507059e+37
    %v998 = vand.u32 %v852, 2147483648
    %v999 = vor.u32 1.1754944e-38, %v998
    %v1000 = vsel %vm997, %v999, %v995
    %v1001 = vrcp.pop %v855
    %v1002 = vmul.f32 %v855, %v1001
    %v1003 = vsub.f32 1.0, %v1002
    %v1004 = vmul.f32 %v1001, %v1003
    %v1005 = vadd.f32 %v1001, %v1004
    %vm1006 = vweird.f32 %v855
    %vm1007 = vweird.f32 %v1001
    %vm1008 = vmor %vm1006, %vm1007
    %v1009 = vsel %vm1008, %v1001, %v1005
    %v1010 = vand.u32 2147483647, %v855
    %vm1011 = vcmp.eq.f32.partialorder %v1010, 8.507059e+37
    %v1012 = vand.u32 %v855, 2147483648
    %v1013 = vor.u32 1.1754944e-38, %v1012
    %v1014 = vsel %vm1011, %v1013, %v1009
    %v1015 = vrcp.pop %v858
    %v1016 = vmul.f32 %v858, %v1015
    %v1017 = vsub.f32 1.0, %v1016
    %v1018 = vmul.f32 %v1015, %v1017
    %v1019 = vadd.f32 %v1015, %v1018
    %vm1020 = vweird.f32 %v858
    %vm1021 = vweird.f32 %v1015
    %vm1022 = vmor %vm1020, %vm1021
    %v1023 = vsel %vm1022, %v1015, %v1019
    %v1024 = vand.u32 2147483647, %v858
    %vm1025 = vcmp.eq.f32.partialorder %v1024, 8.507059e+37
    %v1026 = vand.u32 %v858, 2147483648
    %v1027 = vor.u32 1.1754944e-38, %v1026
    %v1028 = vsel %vm1025, %v1027, %v1023
    %v1029 = vrcp.pop %v861
    %v1030 = vmul.f32 %v861, %v1029
    %v1031 = vsub.f32 1.0, %v1030
    %v1032 = vmul.f32 %v1029, %v1031
    %v1033 = vadd.f32 %v1029, %v1032
    %vm1034 = vweird.f32 %v861
    %vm1035 = vweird.f32 %v1029
    %vm1036 = vmor %vm1034, %vm1035
    %v1037 = vsel %vm1036, %v1029, %v1033
    %v1038 = vand.u32 2147483647, %v861
    %vm1039 = vcmp.eq.f32.partialorder %v1038, 8.507059e+37
    %v1040 = vand.u32 %v861, 2147483648
    %v1041 = vor.u32 1.1754944e-38, %v1040
    %v1042 = vsel %vm1039, %v1041, %v1037
    %v1043 = vrcp.pop %v864
    %v1044 = vmul.f32 %v864, %v1043
    %v1045 = vsub.f32 1.0, %v1044
    %v1046 = vmul.f32 %v1043, %v1045
    %v1047 = vadd.f32 %v1043, %v1046
    %vm1048 = vweird.f32 %v864
    %vm1049 = vweird.f32 %v1043
    %vm1050 = vmor %vm1048, %vm1049
    %v1051 = vsel %vm1050, %v1043, %v1047
    %v1052 = vand.u32 2147483647, %v864
    %vm1053 = vcmp.eq.f32.partialorder %v1052, 8.507059e+37
    %v1054 = vand.u32 %v864, 2147483648
    %v1055 = vor.u32 1.1754944e-38, %v1054
    %v1056 = vsel %vm1053, %v1055, %v1051
    %v1057 = vrcp.pop %v867
    %v1058 = vmul.f32 %v867, %v1057
    %v1059 = vsub.f32 1.0, %v1058
    %v1060 = vmul.f32 %v1057, %v1059
    %v1061 = vadd.f32 %v1057, %v1060
    %vm1062 = vweird.f32 %v867
    %vm1063 = vweird.f32 %v1057
    %vm1064 = vmor %vm1062, %vm1063
    %v1065 = vsel %vm1064, %v1057, %v1061
    %v1066 = vand.u32 2147483647, %v867
    %vm1067 = vcmp.eq.f32.partialorder %v1066, 8.507059e+37
    %v1068 = vand.u32 %v867, 2147483648
    %v1069 = vor.u32 1.1754944e-38, %v1068
    %v1070 = vsel %vm1067, %v1069, %v1065
    %v1071 = vrcp.pop %v870
    %v1072 = vmul.f32 %v870, %v1071
    %v1073 = vsub.f32 1.0, %v1072
    %v1074 = vmul.f32 %v1071, %v1073
    %v1075 = vadd.f32 %v1071, %v1074
    %vm1076 = vweird.f32 %v870
    %vm1077 = vweird.f32 %v1071
    %vm1078 = vmor %vm1076, %vm1077
    %v1079 = vsel %vm1078, %v1071, %v1075
    %v1080 = vand.u32 2147483647, %v870
    %vm1081 = vcmp.eq.f32.partialorder %v1080, 8.507059e+37
    %v1082 = vand.u32 %v870, 2147483648
    %v1083 = vor.u32 1.1754944e-38, %v1082
    %v1084 = vsel %vm1081, %v1083, %v1079
    %v1085 = vrcp.pop %v873
    %v1086 = vmul.f32 %v873, %v1085
    %v1087 = vsub.f32 1.0, %v1086
    %v1088 = vmul.f32 %v1085, %v1087
    %v1089 = vadd.f32 %v1085, %v1088
    %vm1090 = vweird.f32 %v873
    %vm1091 = vweird.f32 %v1085
    %vm1092 = vmor %vm1090, %vm1091
    %v1093 = vsel %vm1092, %v1085, %v1089
    %v1094 = vand.u32 2147483647, %v873
    %vm1095 = vcmp.eq.f32.partialorder %v1094, 8.507059e+37
    %v1096 = vand.u32 %v873, 2147483648
    %v1097 = vor.u32 1.1754944e-38, %v1096
    %v1098 = vsel %vm1095, %v1097, %v1093
    %v1099 = vmul.f32 %v888, %v761
    %v1100 = vmul.f32 %v902, %v761
    %v1101 = vmul.f32 %v916, %v761
    %v1102 = vmul.f32 %v930, %v761
    %v1103 = vmul.f32 %v944, %v761
    %v1104 = vmul.f32 %v958, %v761
    %v1105 = vmul.f32 %v972, %v761
    %v1106 = vmul.f32 %v986, %v761
    %v1107 = vmul.f32 %v1000, %v761
    %v1108 = vmul.f32 %v1014, %v761
    %v1109 = vmul.f32 %v1028, %v761
    %v1110 = vmul.f32 %v1042, %v761
    %v1111 = vmul.f32 %v1056, %v761
    %v1112 = vmul.f32 %v1070, %v761
    %v1113 = vmul.f32 %v1084, %v761
    %v1114 = vmul.f32 %v1098, %v761
    %v1116 = vsel %vm649, %v1099, 0
    %v1119 = vsel %vm649, %v1100, 0
    %v1122 = vsel %vm649, %v1101, 0
    %v1125 = vsel %vm649, %v1102, 0
    %v1128 = vsel %vm649, %v1103, 0
    %v1131 = vsel %vm649, %v1104, 0
    %v1134 = vsel %vm649, %v1105, 0
    %v1137 = vsel %vm649, %v1106, 0
    %v1140 = vsel %vm649, %v1107, 0
    %v1143 = vsel %vm649, %v1108, 0
    %v1146 = vsel %vm649, %v1109, 0
    %v1149 = vsel %vm649, %v1110, 0
    %v1152 = vsel %vm649, %v1111, 0
    %v1155 = vsel %vm649, %v1112, 0
    %v1158 = vsel %vm649, %v1113, 0
    %v1161 = vsel %vm649, %v1114, 0
    %1163 = vmatpush.msra.mxu0 0.0
    %1164 = vmatpush.msra.mxu0 0.0
    %1165 = vmatpush.msra.mxu0 0.0
    %1166 = vmatpush.msra.mxu0 0.0
    %1167 = vmatpush.msra.mxu0 0.0
    %1168 = vmatpush.msra.mxu0 0.0
    %1169 = vmatpush.msra.mxu0 0.0
    %1170 = vmatpush.msra.mxu0 0.0
    %1171 = vmatpush.msra.mxu0 0.0
    %1172 = vmatpush.msra.mxu0 0.0
    %1173 = vmatpush.msra.mxu0 0.0
    %1174 = vmatpush.msra.mxu0 0.0
    %1175 = vmatpush.msra.mxu0 0.0
    %1176 = vmatpush.msra.mxu0 0.0
    %1177 = vmatpush.msra.mxu0 0.0
    %1178 = vmatpush.msra.mxu0 %v755
    %1179 = vmatmul.f32.gmra.mxu0 %v1116
    %v1180 = vpop.f32.mrf.mxu0
    %v1181 = vadd.f32 0.0, %v1180
    %1182 = vmatmul.f32.gmra.mxu0 %v1119
    %v1183 = vpop.f32.mrf.mxu0
    %v1184 = vadd.f32 0.0, %v1183
    %1185 = vmatmul.f32.gmra.mxu0 %v1122
    %v1186 = vpop.f32.mrf.mxu0
    %v1187 = vadd.f32 0.0, %v1186
    %1188 = vmatmul.f32.gmra.mxu0 %v1125
    %v1189 = vpop.f32.mrf.mxu0
    %v1190 = vadd.f32 0.0, %v1189
    %1191 = vmatmul.f32.gmra.mxu0 %v1128
    %v1192 = vpop.f32.mrf.mxu0
    %v1193 = vadd.f32 0.0, %v1192
    %1194 = vmatmul.f32.gmra.mxu0 %v1131
    %v1195 = vpop.f32.mrf.mxu0
    %v1196 = vadd.f32 0.0, %v1195
    %1197 = vmatmul.f32.gmra.mxu0 %v1134
    %v1198 = vpop.f32.mrf.mxu0
    %v1199 = vadd.f32 0.0, %v1198
    %1200 = vmatmul.f32.gmra.mxu0 %v1137
    %v1201 = vpop.f32.mrf.mxu0
    %v1202 = vadd.f32 0.0, %v1201
    %1203 = vmatmul.f32.gmra.mxu0 %v1140
    %v1204 = vpop.f32.mrf.mxu0
    %v1205 = vadd.f32 0.0, %v1204
    %1206 = vmatmul.f32.gmra.mxu0 %v1143
    %v1207 = vpop.f32.mrf.mxu0
    %v1208 = vadd.f32 0.0, %v1207
    %1209 = vmatmul.f32.gmra.mxu0 %v1146
    %v1210 = vpop.f32.mrf.mxu0
    %v1211 = vadd.f32 0.0, %v1210
    %1212 = vmatmul.f32.gmra.mxu0 %v1149
    %v1213 = vpop.f32.mrf.mxu0
    %v1214 = vadd.f32 0.0, %v1213
    %1215 = vmatmul.f32.gmra.mxu0 %v1152
    %v1216 = vpop.f32.mrf.mxu0
    %v1217 = vadd.f32 0.0, %v1216
    %1218 = vmatmul.f32.gmra.mxu0 %v1155
    %v1219 = vpop.f32.mrf.mxu0
    %v1220 = vadd.f32 0.0, %v1219
    %1221 = vmatmul.f32.gmra.mxu0 %v1158
    %v1222 = vpop.f32.mrf.mxu0
    %v1223 = vadd.f32 0.0, %v1222
    %1224 = vmatmul.f32.gmra.mxu0 %v1161
    %v1225 = vpop.f32.mrf.mxu0
    %v1226 = vadd.f32 0.0, %v1225
    %1227 = vdwg.mxu0
    %v1228 = vmul.f32 %v1181, %v758
    %v1229 = vmul.f32 %v1184, %v758
    %v1230 = vmul.f32 %v1187, %v758
    %v1231 = vmul.f32 %v1190, %v758
    %v1232 = vmul.f32 %v1193, %v758
    %v1233 = vmul.f32 %v1196, %v758
    %v1234 = vmul.f32 %v1199, %v758
    %v1235 = vmul.f32 %v1202, %v758
    %v1236 = vmul.f32 %v1205, %v758
    %v1237 = vmul.f32 %v1208, %v758
    %v1238 = vmul.f32 %v1211, %v758
    %v1239 = vmul.f32 %v1214, %v758
    %v1240 = vmul.f32 %v1217, %v758
    %v1241 = vmul.f32 %v1220, %v758
    %v1242 = vmul.f32 %v1223, %v758
    %v1243 = vmul.f32 %v1226, %v758
    %v1244 = vsel %vm649, %v1228, 0.0
    %1245 = vadd.xlane.f32.xlu0 %v1244
    %v1246 = vpop.xlane.xlu0 %1245
    %v1247 = vsel %vm649, %v1229, 0.0
    %1248 = vadd.xlane.f32.xlu0 %v1247
    %v1249 = vpop.xlane.xlu0 %1248
    %v1250 = vsel %vm649, %v1230, 0.0
    %1251 = vadd.xlane.f32.xlu0 %v1250
    %v1252 = vpop.xlane.xlu0 %1251
    %v1253 = vsel %vm649, %v1231, 0.0
    %1254 = vadd.xlane.f32.xlu0 %v1253
    %v1255 = vpop.xlane.xlu0 %1254
    %v1256 = vsel %vm649, %v1232, 0.0
    %1257 = vadd.xlane.f32.xlu0 %v1256
    %v1258 = vpop.xlane.xlu0 %1257
    %v1259 = vsel %vm649, %v1233, 0.0
    %1260 = vadd.xlane.f32.xlu0 %v1259
    %v1261 = vpop.xlane.xlu0 %1260
    %v1262 = vsel %vm649, %v1234, 0.0
    %1263 = vadd.xlane.f32.xlu0 %v1262
    %v1264 = vpop.xlane.xlu0 %1263
    %v1265 = vsel %vm649, %v1235, 0.0
    %1266 = vadd.xlane.f32.xlu0 %v1265
    %v1267 = vpop.xlane.xlu0 %1266
    %v1268 = vsel %vm649, %v1236, 0.0
    %1269 = vadd.xlane.f32.xlu0 %v1268
    %v1270 = vpop.xlane.xlu0 %1269
    %v1271 = vsel %vm649, %v1237, 0.0
    %1272 = vadd.xlane.f32.xlu0 %v1271
    %v1273 = vpop.xlane.xlu0 %1272
    %v1274 = vsel %vm649, %v1238, 0.0
    %1275 = vadd.xlane.f32.xlu0 %v1274
    %v1276 = vpop.xlane.xlu0 %1275
    %v1277 = vsel %vm649, %v1239, 0.0
    %1278 = vadd.xlane.f32.xlu0 %v1277
    %v1279 = vpop.xlane.xlu0 %1278
    %v1280 = vsel %vm649, %v1240, 0.0
    %1281 = vadd.xlane.f32.xlu0 %v1280
    %v1282 = vpop.xlane.xlu0 %1281
    %v1283 = vsel %vm649, %v1241, 0.0
    %1284 = vadd.xlane.f32.xlu0 %v1283
    %v1285 = vpop.xlane.xlu0 %1284
    %v1286 = vsel %vm649, %v1242, 0.0
    %1287 = vadd.xlane.f32.xlu0 %v1286
    %v1288 = vpop.xlane.xlu0 %1287
    %v1289 = vsel %vm649, %v1243, 0.0
    %1290 = vadd.xlane.f32.xlu0 %v1289
    %v1291 = vpop.xlane.xlu0 %1290
    %v1292 = vmin.f32 %v1246, %v1181
    %v1293 = vmin.f32 %v1249, %v1184
    %v1294 = vmin.f32 %v1252, %v1187
    %v1295 = vmin.f32 %v1255, %v1190
    %v1296 = vmin.f32 %v1258, %v1193
    %v1297 = vmin.f32 %v1261, %v1196
    %v1298 = vmin.f32 %v1264, %v1199
    %v1299 = vmin.f32 %v1267, %v1202
    %v1300 = vmin.f32 %v1270, %v1205
    %v1301 = vmin.f32 %v1273, %v1208
    %v1302 = vmin.f32 %v1276, %v1211
    %v1303 = vmin.f32 %v1279, %v1214
    %v1304 = vmin.f32 %v1282, %v1217
    %v1305 = vmin.f32 %v1285, %v1220
    %v1306 = vmin.f32 %v1288, %v1223
    %v1307 = vmin.f32 %v1291, %v1226
    %v1308 = vmul.f32 %v715, %v1292
    %v1309 = vmul.f32 %v717, %v1293
    %v1310 = vmul.f32 %v719, %v1294
    %v1311 = vmul.f32 %v721, %v1295
    %v1312 = vmul.f32 %v723, %v1296
    %v1313 = vmul.f32 %v725, %v1297
    %v1314 = vmul.f32 %v727, %v1298
    %v1315 = vmul.f32 %v729, %v1299
    %v1316 = vmul.f32 %v731, %v1300
    %v1317 = vmul.f32 %v733, %v1301
    %v1318 = vmul.f32 %v735, %v1302
    %v1319 = vmul.f32 %v737, %v1303
    %v1320 = vmul.f32 %v739, %v1304
    %v1321 = vmul.f32 %v741, %v1305
    %v1322 = vmul.f32 %v743, %v1306
    %v1323 = vmul.f32 %v745, %v1307
    %v1324 = vsel %vm649, %v1308, 0.0
    %v1325 = vrot.slane %v1324, 4
    %v1326 = vadd.f32 %v1324, %v1325
    %v1327 = vrot.slane %v1326, 2
    %v1328 = vadd.f32 %v1326, %v1327
    %v1329 = vrot.slane %v1328, 1
    %v1330 = vadd.f32 %v1328, %v1329
    %v1331 = vsel %vm649, %v1309, 0.0
    %v1332 = vrot.slane %v1331, 4
    %v1333 = vadd.f32 %v1331, %v1332
    %v1334 = vrot.slane %v1333, 2
    %v1335 = vadd.f32 %v1333, %v1334
    %v1336 = vrot.slane %v1335, 1
    %v1337 = vadd.f32 %v1335, %v1336
    %v1338 = vsel %vm649, %v1310, 0.0
    %v1339 = vrot.slane %v1338, 4
    %v1340 = vadd.f32 %v1338, %v1339
    %v1341 = vrot.slane %v1340, 2
    %v1342 = vadd.f32 %v1340, %v1341
    %v1343 = vrot.slane %v1342, 1
    %v1344 = vadd.f32 %v1342, %v1343
    %v1345 = vsel %vm649, %v1311, 0.0
    %v1346 = vrot.slane %v1345, 4
    %v1347 = vadd.f32 %v1345, %v1346
    %v1348 = vrot.slane %v1347, 2
    %v1349 = vadd.f32 %v1347, %v1348
    %v1350 = vrot.slane %v1349, 1
    %v1351 = vadd.f32 %v1349, %v1350
    %v1352 = vsel %vm649, %v1312, 0.0
    %v1353 = vrot.slane %v1352, 4
    %v1354 = vadd.f32 %v1352, %v1353
    %v1355 = vrot.slane %v1354, 2
    %v1356 = vadd.f32 %v1354, %v1355
    %v1357 = vrot.slane %v1356, 1
    %v1358 = vadd.f32 %v1356, %v1357
    %v1359 = vsel %vm649, %v1313, 0.0
    %v1360 = vrot.slane %v1359, 4
    %v1361 = vadd.f32 %v1359, %v1360
    %v1362 = vrot.slane %v1361, 2
    %v1363 = vadd.f32 %v1361, %v1362
    %v1364 = vrot.slane %v1363, 1
    %v1365 = vadd.f32 %v1363, %v1364
    %v1366 = vsel %vm649, %v1314, 0.0
    %v1367 = vrot.slane %v1366, 4
    %v1368 = vadd.f32 %v1366, %v1367
    %v1369 = vrot.slane %v1368, 2
    %v1370 = vadd.f32 %v1368, %v1369
    %v1371 = vrot.slane %v1370, 1
    %v1372 = vadd.f32 %v1370, %v1371
    %v1373 = vsel %vm649, %v1315, 0.0
    %v1374 = vrot.slane %v1373, 4
    %v1375 = vadd.f32 %v1373, %v1374
    %v1376 = vrot.slane %v1375, 2
    %v1377 = vadd.f32 %v1375, %v1376
    %v1378 = vrot.slane %v1377, 1
    %v1379 = vadd.f32 %v1377, %v1378
    %v1380 = vsel %vm649, %v1316, 0.0
    %v1381 = vrot.slane %v1380, 4
    %v1382 = vadd.f32 %v1380, %v1381
    %v1383 = vrot.slane %v1382, 2
    %v1384 = vadd.f32 %v1382, %v1383
    %v1385 = vrot.slane %v1384, 1
    %v1386 = vadd.f32 %v1384, %v1385
    %v1387 = vsel %vm649, %v1317, 0.0
    %v1388 = vrot.slane %v1387, 4
    %v1389 = vadd.f32 %v1387, %v1388
    %v1390 = vrot.slane %v1389, 2
    %v1391 = vadd.f32 %v1389, %v1390
    %v1392 = vrot.slane %v1391, 1
    %v1393 = vadd.f32 %v1391, %v1392
    %v1394 = vsel %vm649, %v1318, 0.0
    %v1395 = vrot.slane %v1394, 4
    %v1396 = vadd.f32 %v1394, %v1395
    %v1397 = vrot.slane %v1396, 2
    %v1398 = vadd.f32 %v1396, %v1397
    %v1399 = vrot.slane %v1398, 1
    %v1400 = vadd.f32 %v1398, %v1399
    %v1401 = vsel %vm649, %v1319, 0.0
    %v1402 = vrot.slane %v1401, 4
    %v1403 = vadd.f32 %v1401, %v1402
    %v1404 = vrot.slane %v1403, 2
    %v1405 = vadd.f32 %v1403, %v1404
    %v1406 = vrot.slane %v1405, 1
    %v1407 = vadd.f32 %v1405, %v1406
    %v1408 = vsel %vm649, %v1320, 0.0
    %v1409 = vrot.slane %v1408, 4
    %v1410 = vadd.f32 %v1408, %v1409
    %v1411 = vrot.slane %v1410, 2
    %v1412 = vadd.f32 %v1410, %v1411
    %v1413 = vrot.slane %v1412, 1
    %v1414 = vadd.f32 %v1412, %v1413
    %v1415 = vsel %vm649, %v1321, 0.0
    %v1416 = vrot.slane %v1415, 4
    %v1417 = vadd.f32 %v1415, %v1416
    %v1418 = vrot.slane %v1417, 2
    %v1419 = vadd.f32 %v1417, %v1418
    %v1420 = vrot.slane %v1419, 1
    %v1421 = vadd.f32 %v1419, %v1420
    %v1422 = vsel %vm649, %v1322, 0.0
    %v1423 = vrot.slane %v1422, 4
    %v1424 = vadd.f32 %v1422, %v1423
    %v1425 = vrot.slane %v1424, 2
    %v1426 = vadd.f32 %v1424, %v1425
    %v1427 = vrot.slane %v1426, 1
    %v1428 = vadd.f32 %v1426, %v1427
    %v1429 = vsel %vm649, %v1323, 0.0
    %v1430 = vrot.slane %v1429, 4
    %v1431 = vadd.f32 %v1429, %v1430
    %v1432 = vrot.slane %v1431, 2
    %v1433 = vadd.f32 %v1431, %v1432
    %v1434 = vrot.slane %v1433, 1
    %v1435 = vadd.f32 %v1433, %v1434
    %v1436 = vlaneseq
    %v1437 = vshrl.u32 %v1436, 7
    %1439 = vset.pattern.permute.xlu0 %v1437
    %1440 = vperm.xlu0 %1439, %v1330
    %v1441 = vpop.permute.xlu0 %1440
    %v1442 = vlaneseq
    %v1443 = vshrl.u32 %v1442, 7
    %1445 = vset.pattern.permute.xlu0 %v1443
    %1446 = vperm.xlu0 %1445, %v1337
    %v1447 = vpop.permute.xlu0 %1446
    %v1448 = vlaneseq
    %v1449 = vshrl.u32 %v1448, 7
    %1451 = vset.pattern.permute.xlu0 %v1449
    %1452 = vperm.xlu0 %1451, %v1344
    %v1453 = vpop.permute.xlu0 %1452
    %v1454 = vlaneseq
    %v1455 = vshrl.u32 %v1454, 7
    %1457 = vset.pattern.permute.xlu0 %v1455
    %1458 = vperm.xlu0 %1457, %v1351
    %v1459 = vpop.permute.xlu0 %1458
    %v1460 = vlaneseq
    %v1461 = vshrl.u32 %v1460, 7
    %1463 = vset.pattern.permute.xlu0 %v1461
    %1464 = vperm.xlu0 %1463, %v1358
    %v1465 = vpop.permute.xlu0 %1464
    %v1466 = vlaneseq
    %v1467 = vshrl.u32 %v1466, 7
    %1469 = vset.pattern.permute.xlu0 %v1467
    %1470 = vperm.xlu0 %1469, %v1365
    %v1471 = vpop.permute.xlu0 %1470
    %v1472 = vlaneseq
    %v1473 = vshrl.u32 %v1472, 7
    %1475 = vset.pattern.permute.xlu0 %v1473
    %1476 = vperm.xlu0 %1475, %v1372
    %v1477 = vpop.permute.xlu0 %1476
    %v1478 = vlaneseq
    %v1479 = vshrl.u32 %v1478, 7
    %1481 = vset.pattern.permute.xlu0 %v1479
    %1482 = vperm.xlu0 %1481, %v1379
    %v1483 = vpop.permute.xlu0 %1482
    %v1484 = vlaneseq
    %v1485 = vshrl.u32 %v1484, 7
    %1487 = vset.pattern.permute.xlu0 %v1485
    %1488 = vperm.xlu0 %1487, %v1386
    %v1489 = vpop.permute.xlu0 %1488
    %v1490 = vlaneseq
    %v1491 = vshrl.u32 %v1490, 7
    %1493 = vset.pattern.permute.xlu0 %v1491
    %1494 = vperm.xlu0 %1493, %v1393
    %v1495 = vpop.permute.xlu0 %1494
    %v1496 = vlaneseq
    %v1497 = vshrl.u32 %v1496, 7
    %1499 = vset.pattern.permute.xlu0 %v1497
    %1500 = vperm.xlu0 %1499, %v1400
    %v1501 = vpop.permute.xlu0 %1500
    %v1502 = vlaneseq
    %v1503 = vshrl.u32 %v1502, 7
    %1505 = vset.pattern.permute.xlu0 %v1503
    %1506 = vperm.xlu0 %1505, %v1407
    %v1507 = vpop.permute.xlu0 %1506
    %v1508 = vlaneseq
    %v1509 = vshrl.u32 %v1508, 7
    %1511 = vset.pattern.permute.xlu0 %v1509
    %1512 = vperm.xlu0 %1511, %v1414
    %v1513 = vpop.permute.xlu0 %1512
    %v1514 = vlaneseq
    %v1515 = vshrl.u32 %v1514, 7
    %1517 = vset.pattern.permute.xlu0 %v1515
    %1518 = vperm.xlu0 %1517, %v1421
    %v1519 = vpop.permute.xlu0 %1518
    %v1520 = vlaneseq
    %v1521 = vshrl.u32 %v1520, 7
    %1523 = vset.pattern.permute.xlu0 %v1521
    %1524 = vperm.xlu0 %1523, %v1428
    %v1525 = vpop.permute.xlu0 %1524
    %v1526 = vlaneseq
    %v1527 = vshrl.u32 %v1526, 7
    %1529 = vset.pattern.permute.xlu0 %v1527
    %1530 = vperm.xlu0 %1529, %v1435
    %v1531 = vpop.permute.xlu0 %1530
    %v1532 = vmul.f32 %v1441, %v201
    %v1533 = vmul.f32 %v1447, %v202
    %v1534 = vmul.f32 %v1453, %v203
    %v1535 = vmul.f32 %v1459, %v204
    %v1536 = vmul.f32 %v1465, %v205
    %v1537 = vmul.f32 %v1471, %v206
    %v1538 = vmul.f32 %v1477, %v207
    %v1539 = vmul.f32 %v1483, %v208
    %v1540 = vmul.f32 %v1489, %v209
    %v1541 = vmul.f32 %v1495, %v210
    %v1542 = vmul.f32 %v1501, %v211
    %v1543 = vmul.f32 %v1507, %v212
    %v1544 = vmul.f32 %v1513, %v213
    %v1545 = vmul.f32 %v1519, %v214
    %v1546 = vmul.f32 %v1525, %v215
    %v1547 = vmul.f32 %v1531, %v216
    %vm1548 = vcmask 785920
    %v1549 = vsel %vm1548, %v1532, 0.0
    %v1550 = vrot.slane %v1549, 4
    %v1551 = vadd.f32 %v1549, %v1550
    %v1552 = vrot.slane %v1551, 2
    %v1553 = vadd.f32 %v1551, %v1552
    %v1554 = vrot.slane %v1553, 1
    %v1555 = vadd.f32 %v1553, %v1554
    %v1556 = vsel %vm1548, %v1533, 0.0
    %v1557 = vrot.slane %v1556, 4
    %v1558 = vadd.f32 %v1556, %v1557
    %v1559 = vrot.slane %v1558, 2
    %v1560 = vadd.f32 %v1558, %v1559
    %v1561 = vrot.slane %v1560, 1
    %v1562 = vadd.f32 %v1560, %v1561
    %v1563 = vsel %vm1548, %v1534, 0.0
    %v1564 = vrot.slane %v1563, 4
    %v1565 = vadd.f32 %v1563, %v1564
    %v1566 = vrot.slane %v1565, 2
    %v1567 = vadd.f32 %v1565, %v1566
    %v1568 = vrot.slane %v1567, 1
    %v1569 = vadd.f32 %v1567, %v1568
    %v1570 = vsel %vm1548, %v1535, 0.0
    %v1571 = vrot.slane %v1570, 4
    %v1572 = vadd.f32 %v1570, %v1571
    %v1573 = vrot.slane %v1572, 2
    %v1574 = vadd.f32 %v1572, %v1573
    %v1575 = vrot.slane %v1574, 1
    %v1576 = vadd.f32 %v1574, %v1575
    %v1577 = vsel %vm1548, %v1536, 0.0
    %v1578 = vrot.slane %v1577, 4
    %v1579 = vadd.f32 %v1577, %v1578
    %v1580 = vrot.slane %v1579, 2
    %v1581 = vadd.f32 %v1579, %v1580
    %v1582 = vrot.slane %v1581, 1
    %v1583 = vadd.f32 %v1581, %v1582
    %v1584 = vsel %vm1548, %v1537, 0.0
    %v1585 = vrot.slane %v1584, 4
    %v1586 = vadd.f32 %v1584, %v1585
    %v1587 = vrot.slane %v1586, 2
    %v1588 = vadd.f32 %v1586, %v1587
    %v1589 = vrot.slane %v1588, 1
    %v1590 = vadd.f32 %v1588, %v1589
    %v1591 = vsel %vm1548, %v1538, 0.0
    %v1592 = vrot.slane %v1591, 4
    %v1593 = vadd.f32 %v1591, %v1592
    %v1594 = vrot.slane %v1593, 2
    %v1595 = vadd.f32 %v1593, %v1594
    %v1596 = vrot.slane %v1595, 1
    %v1597 = vadd.f32 %v1595, %v1596
    %v1598 = vsel %vm1548, %v1539, 0.0
    %v1599 = vrot.slane %v1598, 4
    %v1600 = vadd.f32 %v1598, %v1599
    %v1601 = vrot.slane %v1600, 2
    %v1602 = vadd.f32 %v1600, %v1601
    %v1603 = vrot.slane %v1602, 1
    %v1604 = vadd.f32 %v1602, %v1603
    %v1605 = vsel %vm1548, %v1540, 0.0
    %v1606 = vrot.slane %v1605, 4
    %v1607 = vadd.f32 %v1605, %v1606
    %v1608 = vrot.slane %v1607, 2
    %v1609 = vadd.f32 %v1607, %v1608
    %v1610 = vrot.slane %v1609, 1
    %v1611 = vadd.f32 %v1609, %v1610
    %v1612 = vsel %vm1548, %v1541, 0.0
    %v1613 = vrot.slane %v1612, 4
    %v1614 = vadd.f32 %v1612, %v1613
    %v1615 = vrot.slane %v1614, 2
    %v1616 = vadd.f32 %v1614, %v1615
    %v1617 = vrot.slane %v1616, 1
    %v1618 = vadd.f32 %v1616, %v1617
    %v1619 = vsel %vm1548, %v1542, 0.0
    %v1620 = vrot.slane %v1619, 4
    %v1621 = vadd.f32 %v1619, %v1620
    %v1622 = vrot.slane %v1621, 2
    %v1623 = vadd.f32 %v1621, %v1622
    %v1624 = vrot.slane %v1623, 1
    %v1625 = vadd.f32 %v1623, %v1624
    %v1626 = vsel %vm1548, %v1543, 0.0
    %v1627 = vrot.slane %v1626, 4
    %v1628 = vadd.f32 %v1626, %v1627
    %v1629 = vrot.slane %v1628, 2
    %v1630 = vadd.f32 %v1628, %v1629
    %v1631 = vrot.slane %v1630, 1
    %v1632 = vadd.f32 %v1630, %v1631
    %v1633 = vsel %vm1548, %v1544, 0.0
    %v1634 = vrot.slane %v1633, 4
    %v1635 = vadd.f32 %v1633, %v1634
    %v1636 = vrot.slane %v1635, 2
    %v1637 = vadd.f32 %v1635, %v1636
    %v1638 = vrot.slane %v1637, 1
    %v1639 = vadd.f32 %v1637, %v1638
    %v1640 = vsel %vm1548, %v1545, 0.0
    %v1641 = vrot.slane %v1640, 4
    %v1642 = vadd.f32 %v1640, %v1641
    %v1643 = vrot.slane %v1642, 2
    %v1644 = vadd.f32 %v1642, %v1643
    %v1645 = vrot.slane %v1644, 1
    %v1646 = vadd.f32 %v1644, %v1645
    %v1647 = vsel %vm1548, %v1546, 0.0
    %v1648 = vrot.slane %v1647, 4
    %v1649 = vadd.f32 %v1647, %v1648
    %v1650 = vrot.slane %v1649, 2
    %v1651 = vadd.f32 %v1649, %v1650
    %v1652 = vrot.slane %v1651, 1
    %v1653 = vadd.f32 %v1651, %v1652
    %v1654 = vsel %vm1548, %v1547, 0.0
    %v1655 = vrot.slane %v1654, 4
    %v1656 = vadd.f32 %v1654, %v1655
    %v1657 = vrot.slane %v1656, 2
    %v1658 = vadd.f32 %v1656, %v1657
    %v1659 = vrot.slane %v1658, 1
    %v1660 = vadd.f32 %v1658, %v1659
    %v1661 = vld [vmem:[#allocation7] sm:$0x7]
    %v1662 = vsel %vm87, %v63, 0.0
    %v1663 = vrot.slane %v1662, 4
    %v1664 = vadd.f32 %v1662, %v1663
    %v1665 = vrot.slane %v1664, 2
    %v1666 = vadd.f32 %v1664, %v1665
    %v1667 = vrot.slane %v1666, 1
    %v1668 = vadd.f32 %v1666, %v1667
    %v1669 = vsel %vm87, %v64, 0.0
    %v1670 = vrot.slane %v1669, 4
    %v1671 = vadd.f32 %v1669, %v1670
    %v1672 = vrot.slane %v1671, 2
    %v1673 = vadd.f32 %v1671, %v1672
    %v1674 = vrot.slane %v1673, 1
    %v1675 = vadd.f32 %v1673, %v1674
    %v1676 = vsel %vm87, %v65, 0.0
    %v1677 = vrot.slane %v1676, 4
    %v1678 = vadd.f32 %v1676, %v1677
    %v1679 = vrot.slane %v1678, 2
    %v1680 = vadd.f32 %v1678, %v1679
    %v1681 = vrot.slane %v1680, 1
    %v1682 = vadd.f32 %v1680, %v1681
    %v1683 = vsel %vm87, %v66, 0.0
    %v1684 = vrot.slane %v1683, 4
    %v1685 = vadd.f32 %v1683, %v1684
    %v1686 = vrot.slane %v1685, 2
    %v1687 = vadd.f32 %v1685, %v1686
    %v1688 = vrot.slane %v1687, 1
    %v1689 = vadd.f32 %v1687, %v1688
    %v1690 = vsel %vm87, %v67, 0.0
    %v1691 = vrot.slane %v1690, 4
    %v1692 = vadd.f32 %v1690, %v1691
    %v1693 = vrot.slane %v1692, 2
    %v1694 = vadd.f32 %v1692, %v1693
    %v1695 = vrot.slane %v1694, 1
    %v1696 = vadd.f32 %v1694, %v1695
    %v1697 = vsel %vm87, %v68, 0.0
    %v1698 = vrot.slane %v1697, 4
    %v1699 = vadd.f32 %v1697, %v1698
    %v1700 = vrot.slane %v1699, 2
    %v1701 = vadd.f32 %v1699, %v1700
    %v1702 = vrot.slane %v1701, 1
    %v1703 = vadd.f32 %v1701, %v1702
    %v1704 = vsel %vm87, %v69, 0.0
    %v1705 = vrot.slane %v1704, 4
    %v1706 = vadd.f32 %v1704, %v1705
    %v1707 = vrot.slane %v1706, 2
    %v1708 = vadd.f32 %v1706, %v1707
    %v1709 = vrot.slane %v1708, 1
    %v1710 = vadd.f32 %v1708, %v1709
    %v1711 = vsel %vm87, %v70, 0.0
    %v1712 = vrot.slane %v1711, 4
    %v1713 = vadd.f32 %v1711, %v1712
    %v1714 = vrot.slane %v1713, 2
    %v1715 = vadd.f32 %v1713, %v1714
    %v1716 = vrot.slane %v1715, 1
    %v1717 = vadd.f32 %v1715, %v1716
    %v1718 = vsel %vm87, %v71, 0.0
    %v1719 = vrot.slane %v1718, 4
    %v1720 = vadd.f32 %v1718, %v1719
    %v1721 = vrot.slane %v1720, 2
    %v1722 = vadd.f32 %v1720, %v1721
    %v1723 = vrot.slane %v1722, 1
    %v1724 = vadd.f32 %v1722, %v1723
    %v1725 = vsel %vm87, %v72, 0.0
    %v1726 = vrot.slane %v1725, 4
    %v1727 = vadd.f32 %v1725, %v1726
    %v1728 = vrot.slane %v1727, 2
    %v1729 = vadd.f32 %v1727, %v1728
    %v1730 = vrot.slane %v1729, 1
    %v1731 = vadd.f32 %v1729, %v1730
    %v1732 = vsel %vm87, %v73, 0.0
    %v1733 = vrot.slane %v1732, 4
    %v1734 = vadd.f32 %v1732, %v1733
    %v1735 = vrot.slane %v1734, 2
    %v1736 = vadd.f32 %v1734, %v1735
    %v1737 = vrot.slane %v1736, 1
    %v1738 = vadd.f32 %v1736, %v1737
    %v1739 = vsel %vm87, %v74, 0.0
    %v1740 = vrot.slane %v1739, 4
    %v1741 = vadd.f32 %v1739, %v1740
    %v1742 = vrot.slane %v1741, 2
    %v1743 = vadd.f32 %v1741, %v1742
    %v1744 = vrot.slane %v1743, 1
    %v1745 = vadd.f32 %v1743, %v1744
    %v1746 = vsel %vm87, %v75, 0.0
    %v1747 = vrot.slane %v1746, 4
    %v1748 = vadd.f32 %v1746, %v1747
    %v1749 = vrot.slane %v1748, 2
    %v1750 = vadd.f32 %v1748, %v1749
    %v1751 = vrot.slane %v1750, 1
    %v1752 = vadd.f32 %v1750, %v1751
    %v1753 = vsel %vm87, %v76, 0.0
    %v1754 = vrot.slane %v1753, 4
    %v1755 = vadd.f32 %v1753, %v1754
    %v1756 = vrot.slane %v1755, 2
    %v1757 = vadd.f32 %v1755, %v1756
    %v1758 = vrot.slane %v1757, 1
    %v1759 = vadd.f32 %v1757, %v1758
    %v1760 = vsel %vm87, %v77, 0.0
    %v1761 = vrot.slane %v1760, 4
    %v1762 = vadd.f32 %v1760, %v1761
    %v1763 = vrot.slane %v1762, 2
    %v1764 = vadd.f32 %v1762, %v1763
    %v1765 = vrot.slane %v1764, 1
    %v1766 = vadd.f32 %v1764, %v1765
    %v1767 = vsel %vm87, %v78, 0.0
    %v1768 = vrot.slane %v1767, 4
    %v1769 = vadd.f32 %v1767, %v1768
    %v1770 = vrot.slane %v1769, 2
    %v1771 = vadd.f32 %v1769, %v1770
    %v1772 = vrot.slane %v1771, 1
    %v1773 = vadd.f32 %v1771, %v1772
    %v1774 = vperm.slane %v1661, 0
    %1776 = vrot.lane.b32.xlu0 %v1774, 64
    %v1777 = vpop.permute.xlu0 %1776
    %v1779 = vmul.f32 %v1555, %v1777
    %v1780 = vmul.f32 %v1562, %v1777
    %v1781 = vmul.f32 %v1569, %v1777
    %v1782 = vmul.f32 %v1576, %v1777
    %v1783 = vmul.f32 %v1583, %v1777
    %v1784 = vmul.f32 %v1590, %v1777
    %v1785 = vmul.f32 %v1597, %v1777
    %v1786 = vmul.f32 %v1604, %v1777
    %v1787 = vmul.f32 %v1611, %v1777
    %v1788 = vmul.f32 %v1618, %v1777
    %v1789 = vmul.f32 %v1625, %v1777
    %v1790 = vmul.f32 %v1632, %v1777
    %v1791 = vmul.f32 %v1639, %v1777
    %v1792 = vmul.f32 %v1646, %v1777
    %v1793 = vmul.f32 %v1653, %v1777
    %v1794 = vmul.f32 %v1660, %v1777
    %v1795 = vperm.slane %v1661, 1
    %v1796 = vmul.f32 %v1668, %v1795
    %v1797 = vmul.f32 %v1675, %v1795
    %v1798 = vmul.f32 %v1682, %v1795
    %v1799 = vmul.f32 %v1689, %v1795
    %v1800 = vmul.f32 %v1696, %v1795
    %v1801 = vmul.f32 %v1703, %v1795
    %v1802 = vmul.f32 %v1710, %v1795
    %v1803 = vmul.f32 %v1717, %v1795
    %v1804 = vmul.f32 %v1724, %v1795
    %v1805 = vmul.f32 %v1731, %v1795
    %v1806 = vmul.f32 %v1738, %v1795
    %v1807 = vmul.f32 %v1745, %v1795
    %v1808 = vmul.f32 %v1752, %v1795
    %v1809 = vmul.f32 %v1759, %v1795
    %v1810 = vmul.f32 %v1766, %v1795
    %v1811 = vmul.f32 %v1773, %v1795
    %1828 = vrot.lane.b32.xlu0 %v1796, 64
    %v1829 = vpop.permute.xlu0 %1828
    %1830 = vrot.lane.b32.xlu0 %v1797, 64
    %v1831 = vpop.permute.xlu0 %1830
    %1832 = vrot.lane.b32.xlu0 %v1798, 64
    %v1833 = vpop.permute.xlu0 %1832
    %1834 = vrot.lane.b32.xlu0 %v1799, 64
    %v1835 = vpop.permute.xlu0 %1834
    %1836 = vrot.lane.b32.xlu0 %v1800, 64
    %v1837 = vpop.permute.xlu0 %1836
    %1838 = vrot.lane.b32.xlu0 %v1801, 64
    %v1839 = vpop.permute.xlu0 %1838
    %1840 = vrot.lane.b32.xlu0 %v1802, 64
    %v1841 = vpop.permute.xlu0 %1840
    %1842 = vrot.lane.b32.xlu0 %v1803, 64
    %v1843 = vpop.permute.xlu0 %1842
    %1844 = vrot.lane.b32.xlu0 %v1804, 64
    %v1845 = vpop.permute.xlu0 %1844
    %1846 = vrot.lane.b32.xlu0 %v1805, 64
    %v1847 = vpop.permute.xlu0 %1846
    %1848 = vrot.lane.b32.xlu0 %v1806, 64
    %v1849 = vpop.permute.xlu0 %1848
    %1850 = vrot.lane.b32.xlu0 %v1807, 64
    %v1851 = vpop.permute.xlu0 %1850
    %1852 = vrot.lane.b32.xlu0 %v1808, 64
    %v1853 = vpop.permute.xlu0 %1852
    %1854 = vrot.lane.b32.xlu0 %v1809, 64
    %v1855 = vpop.permute.xlu0 %1854
    %1856 = vrot.lane.b32.xlu0 %v1810, 64
    %v1857 = vpop.permute.xlu0 %1856
    %1858 = vrot.lane.b32.xlu0 %v1811, 64
    %v1859 = vpop.permute.xlu0 %1858
    %v1876 = vadd.f32 %v1779, %v1829
    %v1877 = vadd.f32 %v1780, %v1831
    %v1878 = vadd.f32 %v1781, %v1833
    %v1879 = vadd.f32 %v1782, %v1835
    %v1880 = vadd.f32 %v1783, %v1837
    %v1881 = vadd.f32 %v1784, %v1839
    %v1882 = vadd.f32 %v1785, %v1841
    %v1883 = vadd.f32 %v1786, %v1843
    %v1884 = vadd.f32 %v1787, %v1845
    %v1885 = vadd.f32 %v1788, %v1847
    %v1886 = vadd.f32 %v1789, %v1849
    %v1887 = vadd.f32 %v1790, %v1851
    %v1888 = vadd.f32 %v1791, %v1853
    %v1889 = vadd.f32 %v1792, %v1855
    %v1890 = vadd.f32 %v1793, %v1857
    %v1891 = vadd.f32 %v1794, %v1859
    %v1892 = vmul.f32 %v1661, 8.0
    %v1893 = vperm.slane %v1892, 2
    %1895 = vrot.lane.b32.xlu0 %v1893, 64
    %v1896 = vpop.permute.xlu0 %1895
    %v1898 = vadd.f32 %v1876, %v1896
    %v1899 = vadd.f32 %v1877, %v1896
    %v1900 = vadd.f32 %v1878, %v1896
    %v1901 = vadd.f32 %v1879, %v1896
    %v1902 = vadd.f32 %v1880, %v1896
    %v1903 = vadd.f32 %v1881, %v1896
    %v1904 = vadd.f32 %v1882, %v1896
    %v1905 = vadd.f32 %v1883, %v1896
    %v1906 = vadd.f32 %v1884, %v1896
    %v1907 = vadd.f32 %v1885, %v1896
    %v1908 = vadd.f32 %v1886, %v1896
    %v1909 = vadd.f32 %v1887, %v1896
    %v1910 = vadd.f32 %v1888, %v1896
    %v1911 = vadd.f32 %v1889, %v1896
    %v1912 = vadd.f32 %v1890, %v1896
    %v1913 = vadd.f32 %v1891, %v1896
    %v1930 = vrot.slane %v1899, 7
    %vm1931 = vcmask 1041409
    %v1932 = vsel %vm1931, %v1930, %v1898
    %v1933 = vrot.slane %v1900, 6
    %vm1934 = vcmask 1042434
    %v1935 = vsel %vm1934, %v1933, %v1932
    %v1936 = vrot.slane %v1901, 5
    %vm1937 = vcmask 1043459
    %v1938 = vsel %vm1937, %v1936, %v1935
    %v1939 = vrot.slane %v1902, 4
    %vm1940 = vcmask 1044484
    %v1941 = vsel %vm1940, %v1939, %v1938
    %v1942 = vrot.slane %v1903, 3
    %vm1943 = vcmask 1045509
    %v1944 = vsel %vm1943, %v1942, %v1941
    %v1945 = vrot.slane %v1904, 2
    %vm1946 = vcmask 1046534
    %v1947 = vsel %vm1946, %v1945, %v1944
    %v1948 = vrot.slane %v1905, 1
    %vm1949 = vcmask 1047559
    %v1950 = vsel %vm1949, %v1948, %v1947
    %v1951 = vrot.slane %v1907, 7
    %v1952 = vsel %vm1931, %v1951, %v1906
    %v1953 = vrot.slane %v1908, 6
    %v1954 = vsel %vm1934, %v1953, %v1952
    %v1955 = vrot.slane %v1909, 5
    %v1956 = vsel %vm1937, %v1955, %v1954
    %v1957 = vrot.slane %v1910, 4
    %v1958 = vsel %vm1940, %v1957, %v1956
    %v1959 = vrot.slane %v1911, 3
    %v1960 = vsel %vm1943, %v1959, %v1958
    %v1961 = vrot.slane %v1912, 2
    %v1962 = vsel %vm1946, %v1961, %v1960
    %v1963 = vrot.slane %v1913, 1
    %v1964 = vsel %vm1949, %v1963, %v1962
    %1965 = vrot.lane.b32.xlu0 %v1950, 64
    %v1966 = vpop.permute.xlu0 %1965
    %1967 = vrot.lane.b32.xlu0 %v1964, 64
    %v1968 = vpop.permute.xlu0 %1967
    %v1971 = vsel %vm87, %v1966, 0.0
    %1972 = vadd.xlane.f32.xlu0 %v1971
    %v1973 = vpop.xlane.xlu0 %1972
    %v1974 = vsel %vm87, %v1968, 0.0
    %1975 = vadd.xlane.f32.xlu0 %v1974
    %v1976 = vpop.xlane.xlu0 %1975
    %v1979 = vperm.slane %v1973, %v749
    %v1980 = vadd.s32 %v749, 4294967288
    %v1981 = vperm.slane %v1976, %v1980
    %vm1982 = vcmask 130112
    %v1983 = vsel %vm1982, %v1981, %v1979
    %vm1985 = vcmask 122880
    %1986 = vst.msk [vmem:[#allocation8] sm:$0x1] %vm1985, %v1983
    // Predicated region
    $region30: #{tpu_custom_call.1} parent=1 // pred_check
      _
    $region31: #{tpu_custom_call.1} parent=1 // pred_check_branch
      %1988 = sbr.rel (0) target = $region33
    $region32: #{tpu_custom_call.1} parent=1 // pred_region
      %1990 = vsyncadd [#allocation4], 0
      %s1992 = sshll.u32 [#allocation8], 4
      %s1993 = int_to_ptr.vmem [resolvable:$true] %s1992
      %s1994 = sshll.u32 %s4, 4
      %s1995 = int_to_ptr.hbm [resolvable:$true] %s1994
      %1997 = dma.vmem_to_hbm [thread:$0]  %s1993, 16, %s1995, [#allocation4]
    $region33: #{tpu_custom_call.1} parent=1 // pred_fallthru
      _
    // Predicated region
    $region34: #{tpu_custom_call.1} parent=1 // pred_check
      _
    $region35: #{tpu_custom_call.1} parent=1 // pred_check_branch
      %1999 = sbr.rel (0) target = $region37
    $region36: #{tpu_custom_call.1} parent=1 // pred_region
      %2001 = dma.done [#allocation4], 16
    $region37: #{tpu_custom_call.1} parent=1 // pred_fallthru
      _
    %2002 = vsyncpa [#allocation3], 1
    %2003 = vsyncpa [#allocation6], 1
    %2004 = vsyncpa [#allocation4], 1

</llo_original>
